<compile_context>
chip_gen: v7x
topology: tpu7x:2x2x1
jax: 0.10.0
libtpu: 0.0.40
codegen_flags: <defaults>
</compile_context>

<pallas_src>
import functools

import jax
import jax.numpy as jnp
from jax.experimental import pallas as pl
from jax.experimental.pallas import tpu as pltpu


def _conv_stats_kernel(x_ref, w_ref, y_ref, stats_ref, *, kernel_size, dilation):
    """Temporal transposed-conv (K shifted batched matmuls) + per-tile BN stats.

    x_ref     : (T_pad, C_in, NVT)   bf16  zero-inserted + padded input tile
    w_ref     : (K, C_out, C_in)     bf16  time-flipped ConvTranspose weights
    y_ref     : (T_out, C_out, NVT)  f32   conv output tile (pre-bias)
    stats_ref : (1, C_out, 2)        f32   per-tile per-channel [sum, sum_sq]
    """
    T_out, C_out, _ = y_ref.shape
    C_in = w_ref.shape[2]

    for k in range(kernel_size):                                  # static tap loop
        xk = x_ref[pl.ds(k * dilation, T_out), :, :]              # (T_out, C_in, NVT)
        wb = jnp.broadcast_to(w_ref[k], (T_out, C_out, C_in))     # (T_out, C_out, C_in)
        pk = jax.lax.dot_general(                                 # batched over T_out
            wb, xk,
            dimension_numbers=(((2,), (1,)), ((0,), (0,))),
            preferred_element_type=jnp.float32)                   # (T_out, C_out, NVT)
        if k == 0:
            y_ref[...] = pk          # accumulate directly in the output VMEM block
        else:
            y_ref[...] += pk

    acc = y_ref[...]                                              # f32
    # per-channel partial sums (padded NV columns are exactly zero -> contribute 0)
    s = jnp.sum(jnp.sum(acc, axis=0), axis=1, keepdims=True)          # (C_out, 1)
    ss = jnp.sum(jnp.sum(acc * acc, axis=0), axis=1, keepdims=True)   # (C_out, 1)
    stats_ref[0, :, :] = jnp.concatenate([s, ss], axis=1)             # (C_out, 2)


def _bn_apply_kernel(y_ref, scale_ref, shift_ref, o_ref):
    """o = y * scale + shift   (per-channel scale/shift, channel = middle dim)."""
    o_ref[...] = (y_ref[...] * scale_ref[...][None, :, :]
                  + shift_ref[...][None, :, :])


def _pick_nv_tile(nv_pad, t_pad, t_out, c_in, c_out):
    """Largest lane tile whose (bf16 x-tile + f32 y-tile) stays small enough that
    double-buffered blocks fit the default scoped VMEM on v5e/v6e/v7x."""
    budget = 8 * 1024 * 1024
    for cand in (1024, 512, 256, 128):
        if nv_pad % cand:
            continue
        x_bytes = t_pad * max(c_in, 16) * cand * 2     # bf16, sublane-padded
        y_bytes = t_out * max(c_out, 8) * cand * 4     # f32,  sublane-padded
        if x_bytes + y_bytes <= budget:
            return cand
    return 128


@functools.partial(jax.jit,
                   static_argnames=("kernel_size", "stride", "dilation", "eps"))
def anti_temporal_conv2d(x, weight, bias, gamma, beta, *,
                         kernel_size, stride=1, dilation=1, eps=1e-5):
    """Forward of AntiTemporalConv2d.

    x      : (N, C_in, T, V)     float32, NCHW
    weight : (C_in, C_out, K, 1) ConvTranspose2d weight
    bias   : (C_out,)            ConvTranspose2d bias
    gamma  : (C_out,)  beta : (C_out,)   BatchNorm2d affine params
    returns: (N, C_out, T_out, V)
    """
    N, C_in, T, V = x.shape
    _, C_out, K, _ = weight.shape
    assert K == kernel_size
    pad = (kernel_size + (kernel_size - 1) * (dilation - 1) - 1) // 2
    T_out = (T - 1) * stride - 2 * pad + dilation * (K - 1) + 1
    NV = N * V

    LANE = 128
    NV_pad = ((NV + LANE - 1) // LANE) * LANE

    T_up = (T - 1) * stride + 1
    p = dilation * (K - 1) - pad          # >= 0 for this pad formula
    T_pad = T_up + 2 * p                  # == T_out + dilation*(K-1)

    # ---- glue: layout change + transposed-conv -> correlation (bf16 slab) ----
    x_t = jnp.transpose(x, (2, 1, 0, 3)).reshape(T, C_in, NV)        # (T, C_in, NV)
    x_slab = jnp.zeros((T_pad, C_in, NV_pad), jnp.bfloat16)
    x_slab = x_slab.at[p:p + T_up:stride, :, :NV].set(x_t.astype(jnp.bfloat16))
    # TODO(synk): for stride>1 the zero-inserted rows are still materialized and
    # multiplied; a polyphase decomposition would skip them (~stride x less DMA/MXU).

    # W_flip[k, o, c] = W[c, o, K-1-k, 0]
    w_flip = jnp.transpose(jnp.flip(weight[:, :, :, 0], axis=2), (2, 1, 0))
    w_flip = w_flip.astype(jnp.bfloat16)                             # (K, C_out, C_in)

    NVT = _pick_nv_tile(NV_pad, T_pad, T_out, C_in, C_out)
    num_tiles = NV_pad // NVT

    flops1 = 2 * K * T_out * C_out * C_in * NV_pad + 4 * T_out * C_out * NV_pad
    bytes1 = (x_slab.size * 2 + w_flip.size * 2
              + T_out * C_out * NV_pad * 4 + num_tiles * C_out * 2 * 4)

    # ---- pass 1: conv (bf16 MXU, f32 acc) + per-tile channel stats ----
    y_conv, stats = pl.pallas_call(
        functools.partial(_conv_stats_kernel, kernel_size=K, dilation=dilation),
        grid=(num_tiles,),
        in_specs=[
            pl.BlockSpec((T_pad, C_in, NVT), lambda j: (0, 0, j)),
            pl.BlockSpec((K, C_out, C_in), lambda j: (0, 0, 0)),
        ],
        out_specs=(
            pl.BlockSpec((T_out, C_out, NVT), lambda j: (0, 0, j)),
            pl.BlockSpec((1, C_out, 2), lambda j: (j, 0, 0)),
        ),
        out_shape=(
            jax.ShapeDtypeStruct((T_out, C_out, NV_pad), jnp.float32),
            jax.ShapeDtypeStruct((num_tiles, C_out, 2), jnp.float32),
        ),
        compiler_params=pltpu.CompilerParams(dimension_semantics=("parallel",)),
        cost_estimate=pl.CostEstimate(flops=flops1, transcendentals=0,
                                      bytes_accessed=bytes1),
    )(x_slab, w_flip)

    # ---- fold per-tile stats into BN scale/shift (tiny (C_out,) math in XLA) ----
    # Padded NV columns contribute exactly 0 to sum/sum_sq -> divide by real count.
    # The ConvTranspose bias cancels exactly inside training-mode BatchNorm
    # ((y+b) - mean(y+b) == y - mean(y), var unchanged), so it never needs adding.
    del bias
    count = float(T_out * NV)
    ch_sum = jnp.sum(stats[:, :, 0], axis=0)
    ch_ssq = jnp.sum(stats[:, :, 1], axis=0)
    mean = ch_sum / count
    var = jnp.maximum(ch_ssq / count - mean * mean, 0.0)
    inv = 1.0 / jnp.sqrt(var + eps)
    scale = (gamma * inv).astype(jnp.float32).reshape(C_out, 1)
    shift = (beta - mean * gamma * inv).astype(jnp.float32).reshape(C_out, 1)

    # ---- pass 2: apply BN (lane-dense, tiled, in-place via aliasing) ----
    y_bn = pl.pallas_call(
        _bn_apply_kernel,
        grid=(num_tiles,),
        in_specs=[
            pl.BlockSpec((T_out, C_out, NVT), lambda j: (0, 0, j)),
            pl.BlockSpec((C_out, 1), lambda j: (0, 0)),
            pl.BlockSpec((C_out, 1), lambda j: (0, 0)),
        ],
        out_specs=pl.BlockSpec((T_out, C_out, NVT), lambda j: (0, 0, j)),
        out_shape=jax.ShapeDtypeStruct((T_out, C_out, NV_pad), jnp.float32),
        compiler_params=pltpu.CompilerParams(dimension_semantics=("parallel",)),
        input_output_aliases={0: 0},
    )(y_conv, scale, shift)

    # back to NCHW
    y = y_bn[:, :, :NV].reshape(T_out, C_out, N, V)
    return jnp.transpose(y, (2, 1, 0, 3))                # (N, C_out, T_out, V)


def _reference(x, weight, bias, gamma, beta, *, kernel_size, stride, dilation, eps):
    """Pure-JAX reference straight from the ConvTranspose2d + BatchNorm2d definition."""
    N, C_in, T, V = x.shape
    _, C_out, K, _ = weight.shape
    pad = (kernel_size + (kernel_size - 1) * (dilation - 1) - 1) // 2
    T_out = (T - 1) * stride - 2 * pad + dilation * (K - 1) + 1
    y = jnp.zeros((N, C_out, T_out, V), jnp.float32)
    for tp in range(T):
        for k in range(K):
            t = tp * stride - pad + k * dilation
            if 0 <= t < T_out:
                y = y.at[:, :, t, :].add(
                    jnp.einsum('niv,io->nov', x[:, :, tp, :], weight[:, :, k, 0]))
    y = y + bias[None, :, None, None]
    mean = jnp.mean(y, axis=(0, 2, 3), keepdims=True)
    var = jnp.mean((y - mean) ** 2, axis=(0, 2, 3), keepdims=True)
    return ((y - mean) / jnp.sqrt(var + eps) * gamma[None, :, None, None]
            + beta[None, :, None, None])


if __name__ == "__main__":
    key = jax.random.PRNGKey(0)
    N, C_in, C_out, T, V = 2, 4, 8, 8, 16
    K = 3
    eps = 1e-5

    k_x, k_w, k_b, k_g, k_be = jax.random.split(key, 5)
    x = jax.random.normal(k_x, (N, C_in, T, V), jnp.float32)
    weight = 0.2 * jax.random.normal(k_w, (C_in, C_out, K, 1), jnp.float32)
    bias = 0.1 * jax.random.normal(k_b, (C_out,), jnp.float32)
    gamma = 1.0 + 0.1 * jax.random.normal(k_g, (C_out,), jnp.float32)
    beta = 0.1 * jax.random.normal(k_be, (C_out,), jnp.float32)

    # The kernel feeds the MXU in bf16; compare against a reference that uses the
    # same bf16-rounded inputs (accumulation is f32 on both paths).
    x_q = x.astype(jnp.bfloat16).astype(jnp.float32)
    w_q = weight.astype(jnp.bfloat16).astype(jnp.float32)

    ok = True
    for stride, dilation in [(1, 1), (2, 2)]:
        out = anti_temporal_conv2d(x, weight, bias, gamma, beta,
                                   kernel_size=K, stride=stride,
                                   dilation=dilation, eps=eps)
        out = jax.block_until_ready(out)
        ref = _reference(x_q, w_q, bias, gamma, beta,
                         kernel_size=K, stride=stride, dilation=dilation, eps=eps)
        if not jnp.allclose(out, ref, atol=2e-3, rtol=2e-3):
            ok = False
            print("MISMATCH stride=%d dilation=%d max_err=%e"
                  % (stride, dilation, float(jnp.max(jnp.abs(out - ref)))))

    # TODO(synk): BatchNorm running_mean/running_var side-effect updates are not
    # modeled (training-mode forward output does not depend on them).
    if ok:
        print("KERNEL_OK")
</pallas_src>

<mosaic_0001>
module attributes {stable_mosaic.version = 11 : i64} {
  func.func @_conv_stats_kernel(%arg0: i32, %arg1: memref<10x4x128xbf16, #tpu.memory_space<vmem>>, %arg2: memref<3x8x4xbf16, #tpu.memory_space<vmem>>, %arg3: memref<8x8x128xf32, #tpu.memory_space<vmem>>, %arg4: memref<1x8x2xf32, #tpu.memory_space<vmem>>) attributes {dimension_semantics = [#tpu.dimension_semantics<parallel>], iteration_bounds = array<i64: 1>, scalar_prefetch = 0 : i64, scratch_operands = 0 : i64, tpu.core_type = #tpu.core_type<tc>, window_params = [{transform_indices = @transform_0, window_bounds = array<i64: 10, 4, 128>}, {pipeline_mode = #tpu.pipeline_mode<synchronous>, transform_indices = @transform_1, window_bounds = array<i64: 3, 8, 4>}, {transform_indices = @transform_2, window_bounds = array<i64: 8, 8, 128>}, {transform_indices = @transform_3, window_bounds = array<i64: 1, 8, 2>}]} {
    %c0 = arith.constant 0 : index
    %c0_0 = arith.constant 0 : index
    %c0_1 = arith.constant 0 : index
    %0 = vector.load %arg1[%c0, %c0_0, %c0_1] : memref<10x4x128xbf16, #tpu.memory_space<vmem>>, vector<8x4x128xbf16>
    %c0_2 = arith.constant 0 : index
    %c0_3 = arith.constant 0 : index
    %c0_4 = arith.constant 0 : index
    %1 = vector.load %arg2[%c0_2, %c0_3, %c0_4] : memref<3x8x4xbf16, #tpu.memory_space<vmem>>, vector<1x8x4xbf16>
    %2 = vector.shape_cast %1 : vector<1x8x4xbf16> to vector<8x4xbf16>
    %3 = vector.shape_cast %2 : vector<8x4xbf16> to vector<1x8x4xbf16>
    %4 = vector.broadcast %3 : vector<1x8x4xbf16> to vector<8x8x4xbf16>
    %cst = arith.constant dense<0.000000e+00> : vector<8x8x128xf32>
    %5 = tpu.matmul %4, %0, %cst {dimension_numbers = #tpu.dot_dimension_numbers<[2], [1], [1], [2], [0, 0, 0, 1, 1, 2], [0], [0]>} : vector<8x8x4xbf16>, vector<8x4x128xbf16>, vector<8x8x128xf32> -> vector<8x8x128xf32>
    %c0_5 = arith.constant 0 : index
    %c0_6 = arith.constant 0 : index
    %c0_7 = arith.constant 0 : index
    %6 = vector.load %arg3[%c0_5, %c0_6, %c0_7] : memref<8x8x128xf32, #tpu.memory_space<vmem>>, vector<8x8x128xf32>
    tpu.vector_store %arg3[%c0_5, %c0_6, %c0_7], %5 {strides = array<i32>} : memref<8x8x128xf32, #tpu.memory_space<vmem>>, vector<8x8x128xf32>,
    %c1 = arith.constant 1 : index
    %c0_8 = arith.constant 0 : index
    %c0_9 = arith.constant 0 : index
    %7 = vector.load %arg1[%c1, %c0_8, %c0_9] : memref<10x4x128xbf16, #tpu.memory_space<vmem>>, vector<8x4x128xbf16>
    %c1_10 = arith.constant 1 : index
    %c0_11 = arith.constant 0 : index
    %c0_12 = arith.constant 0 : index
    %8 = vector.load %arg2[%c1_10, %c0_11, %c0_12] : memref<3x8x4xbf16, #tpu.memory_space<vmem>>, vector<1x8x4xbf16>
    %9 = vector.shape_cast %8 : vector<1x8x4xbf16> to vector<8x4xbf16>
    %10 = vector.shape_cast %9 : vector<8x4xbf16> to vector<1x8x4xbf16>
    %11 = vector.broadcast %10 : vector<1x8x4xbf16> to vector<8x8x4xbf16>
    %cst_13 = arith.constant dense<0.000000e+00> : vector<8x8x128xf32>
    %12 = tpu.matmul %11, %7, %cst_13 {dimension_numbers = #tpu.dot_dimension_numbers<[2], [1], [1], [2], [0, 0, 0, 1, 1, 2], [0], [0]>} : vector<8x8x4xbf16>, vector<8x4x128xbf16>, vector<8x8x128xf32> -> vector<8x8x128xf32>
    %c0_14 = arith.constant 0 : index
    %c0_15 = arith.constant 0 : index
    %c0_16 = arith.constant 0 : index
    %13 = vector.load %arg3[%c0_14, %c0_15, %c0_16] : memref<8x8x128xf32, #tpu.memory_space<vmem>>, vector<8x8x128xf32>
    %14 = arith.addf %13, %12 : vector<8x8x128xf32>
    %c0_17 = arith.constant 0 : index
    %c0_18 = arith.constant 0 : index
    %c0_19 = arith.constant 0 : index
    %15 = vector.load %arg3[%c0_17, %c0_18, %c0_19] : memref<8x8x128xf32, #tpu.memory_space<vmem>>, vector<8x8x128xf32>
    tpu.vector_store %arg3[%c0_17, %c0_18, %c0_19], %14 {strides = array<i32>} : memref<8x8x128xf32, #tpu.memory_space<vmem>>, vector<8x8x128xf32>,
    %c2 = arith.constant 2 : index
    %c0_20 = arith.constant 0 : index
    %c0_21 = arith.constant 0 : index
    %16 = vector.load %arg1[%c2, %c0_20, %c0_21] : memref<10x4x128xbf16, #tpu.memory_space<vmem>>, vector<8x4x128xbf16>
    %c2_22 = arith.constant 2 : index
    %c0_23 = arith.constant 0 : index
    %c0_24 = arith.constant 0 : index
    %17 = vector.load %arg2[%c2_22, %c0_23, %c0_24] : memref<3x8x4xbf16, #tpu.memory_space<vmem>>, vector<1x8x4xbf16>
    %18 = vector.shape_cast %17 : vector<1x8x4xbf16> to vector<8x4xbf16>
    %19 = vector.shape_cast %18 : vector<8x4xbf16> to vector<1x8x4xbf16>
    %20 = vector.broadcast %19 : vector<1x8x4xbf16> to vector<8x8x4xbf16>
    %cst_25 = arith.constant dense<0.000000e+00> : vector<8x8x128xf32>
    %21 = tpu.matmul %20, %16, %cst_25 {dimension_numbers = #tpu.dot_dimension_numbers<[2], [1], [1], [2], [0, 0, 0, 1, 1, 2], [0], [0]>} : vector<8x8x4xbf16>, vector<8x4x128xbf16>, vector<8x8x128xf32> -> vector<8x8x128xf32>
    %c0_26 = arith.constant 0 : index
    %c0_27 = arith.constant 0 : index
    %c0_28 = arith.constant 0 : index
    %22 = vector.load %arg3[%c0_26, %c0_27, %c0_28] : memref<8x8x128xf32, #tpu.memory_space<vmem>>, vector<8x8x128xf32>
    %23 = arith.addf %22, %21 : vector<8x8x128xf32>
    %c0_29 = arith.constant 0 : index
    %c0_30 = arith.constant 0 : index
    %c0_31 = arith.constant 0 : index
    %24 = vector.load %arg3[%c0_29, %c0_30, %c0_31] : memref<8x8x128xf32, #tpu.memory_space<vmem>>, vector<8x8x128xf32>
    tpu.vector_store %arg3[%c0_29, %c0_30, %c0_31], %23 {strides = array<i32>} : memref<8x8x128xf32, #tpu.memory_space<vmem>>, vector<8x8x128xf32>,
    %c0_32 = arith.constant 0 : index
    %c0_33 = arith.constant 0 : index
    %c0_34 = arith.constant 0 : index
    %25 = vector.load %arg3[%c0_32, %c0_33, %c0_34] : memref<8x8x128xf32, #tpu.memory_space<vmem>>, vector<8x8x128xf32>
    %cst_35 = arith.constant dense<0.000000e+00> : vector<8x128xf32>
    %26 = vector.multi_reduction <add>, %25, %cst_35 [0] : vector<8x8x128xf32> to vector<8x128xf32>
    %cst_36 = arith.constant dense<0.000000e+00> : vector<8xf32>
    %27 = vector.multi_reduction <add>, %26, %cst_36 [1] : vector<8x128xf32> to vector<8xf32>
    %28 = vector.shape_cast %27 : vector<8xf32> to vector<8x1xf32>
    %29 = arith.mulf %25, %25 : vector<8x8x128xf32>
    %cst_37 = arith.constant dense<0.000000e+00> : vector<8x128xf32>
    %30 = vector.multi_reduction <add>, %29, %cst_37 [0] : vector<8x8x128xf32> to vector<8x128xf32>
    %cst_38 = arith.constant dense<0.000000e+00> : vector<8xf32>
    %31 = vector.multi_reduction <add>, %30, %cst_38 [1] : vector<8x128xf32> to vector<8xf32>
    %32 = vector.shape_cast %31 : vector<8xf32> to vector<8x1xf32>
    %33 = tpu.concatenate %28, %32 in 1 : vector<8x1xf32>, vector<8x1xf32> -> vector<8x2xf32>
    %c0_39 = arith.constant 0 : index
    %c0_40 = arith.constant 0 : index
    %c0_41 = arith.constant 0 : index
    %34 = vector.load %arg4[%c0_39, %c0_40, %c0_41] : memref<1x8x2xf32, #tpu.memory_space<vmem>>, vector<1x8x2xf32>
    %35 = vector.shape_cast %34 : vector<1x8x2xf32> to vector<8x2xf32>
    %36 = vector.shape_cast %33 : vector<8x2xf32> to vector<1x8x2xf32>
    tpu.vector_store %arg4[%c0_39, %c0_40, %c0_41], %36 {strides = array<i32>} : memref<1x8x2xf32, #tpu.memory_space<vmem>>, vector<1x8x2xf32>,
    return
  }
  func.func @transform_0(%arg0: i32) -> (i32, i32, i32) {
    %c0_i32 = arith.constant 0 : i32
    %c0_i32_0 = arith.constant 0 : i32
    %c0_i32_1 = arith.constant 0 : i32
    return %c0_i32, %c0_i32_0, %arg0 : i32, i32, i32
  }
  func.func @transform_1(%arg0: i32) -> (i32, i32, i32) {
    %c0_i32 = arith.constant 0 : i32
    %c0_i32_0 = arith.constant 0 : i32
    %c0_i32_1 = arith.constant 0 : i32
    %c0_i32_2 = arith.constant 0 : i32
    return %c0_i32, %c0_i32_0, %c0_i32_1 : i32, i32, i32
  }
  func.func @transform_2(%arg0: i32) -> (i32, i32, i32) {
    %c0_i32 = arith.constant 0 : i32
    %c0_i32_0 = arith.constant 0 : i32
    %c0_i32_1 = arith.constant 0 : i32
    return %c0_i32, %c0_i32_0, %arg0 : i32, i32, i32
  }
  func.func @transform_3(%arg0: i32) -> (i32, i32, i32) {
    %c0_i32 = arith.constant 0 : i32
    %c0_i32_0 = arith.constant 0 : i32
    %c0_i32_1 = arith.constant 0 : i32
    return %arg0, %c0_i32, %c0_i32_0 : i32, i32, i32
  }
}

module attributes {stable_mosaic.version = 11 : i64} {
  func.func @_bn_apply_kernel(%arg0: i32, %arg1: memref<8x8x128xf32, #tpu.memory_space<vmem>>, %arg2: memref<8x1xf32, #tpu.memory_space<vmem>>, %arg3: memref<8x1xf32, #tpu.memory_space<vmem>>, %arg4: memref<8x8x128xf32, #tpu.memory_space<vmem>>) attributes {dimension_semantics = [#tpu.dimension_semantics<parallel>], iteration_bounds = array<i64: 1>, scalar_prefetch = 0 : i64, scratch_operands = 0 : i64, tpu.core_type = #tpu.core_type<tc>, window_params = [{transform_indices = @transform_0, window_bounds = array<i64: 8, 8, 128>}, {pipeline_mode = #tpu.pipeline_mode<synchronous>, transform_indices = @transform_1, window_bounds = array<i64: 8, 1>}, {pipeline_mode = #tpu.pipeline_mode<synchronous>, transform_indices = @transform_2, window_bounds = array<i64: 8, 1>}, {transform_indices = @transform_3, window_bounds = array<i64: 8, 8, 128>}]} {
    %c0 = arith.constant 0 : index
    %c0_0 = arith.constant 0 : index
    %c0_1 = arith.constant 0 : index
    %0 = vector.load %arg1[%c0, %c0_0, %c0_1] : memref<8x8x128xf32, #tpu.memory_space<vmem>>, vector<8x8x128xf32>
    %c0_2 = arith.constant 0 : index
    %c0_3 = arith.constant 0 : index
    %1 = vector.load %arg2[%c0_2, %c0_3] : memref<8x1xf32, #tpu.memory_space<vmem>>, vector<8x1xf32>
    %2 = vector.shape_cast %1 : vector<8x1xf32> to vector<1x8x1xf32>
    %3 = vector.broadcast %2 : vector<1x8x1xf32> to vector<8x8x128xf32>
    %4 = arith.mulf %0, %3 : vector<8x8x128xf32>
    %c0_4 = arith.constant 0 : index
    %c0_5 = arith.constant 0 : index
    %5 = vector.load %arg3[%c0_4, %c0_5] : memref<8x1xf32, #tpu.memory_space<vmem>>, vector<8x1xf32>
    %6 = vector.shape_cast %5 : vector<8x1xf32> to vector<1x8x1xf32>
    %7 = vector.broadcast %6 : vector<1x8x1xf32> to vector<8x8x128xf32>
    %8 = arith.addf %4, %7 : vector<8x8x128xf32>
    %c0_6 = arith.constant 0 : index
    %c0_7 = arith.constant 0 : index
    %c0_8 = arith.constant 0 : index
    %9 = vector.load %arg4[%c0_6, %c0_7, %c0_8] : memref<8x8x128xf32, #tpu.memory_space<vmem>>, vector<8x8x128xf32>
    tpu.vector_store %arg4[%c0_6, %c0_7, %c0_8], %8 {strides = array<i32>} : memref<8x8x128xf32, #tpu.memory_space<vmem>>, vector<8x8x128xf32>,
    return
  }
  func.func @transform_0(%arg0: i32) -> (i32, i32, i32) {
    %c0_i32 = arith.constant 0 : i32
    %c0_i32_0 = arith.constant 0 : i32
    %c0_i32_1 = arith.constant 0 : i32
    return %c0_i32, %c0_i32_0, %arg0 : i32, i32, i32
  }
  func.func @transform_1(%arg0: i32) -> (i32, i32) {
    %c0_i32 = arith.constant 0 : i32
    %c0_i32_0 = arith.constant 0 : i32
    %c0_i32_1 = arith.constant 0 : i32
    return %c0_i32, %c0_i32_0 : i32, i32
  }
  func.func @transform_2(%arg0: i32) -> (i32, i32) {
    %c0_i32 = arith.constant 0 : i32
    %c0_i32_0 = arith.constant 0 : i32
    %c0_i32_1 = arith.constant 0 : i32
    return %c0_i32, %c0_i32_0 : i32, i32
  }
  func.func @transform_3(%arg0: i32) -> (i32, i32, i32) {
    %c0_i32 = arith.constant 0 : i32
    %c0_i32_0 = arith.constant 0 : i32
    %c0_i32_1 = arith.constant 0 : i32
    return %c0_i32, %c0_i32_0, %arg0 : i32, i32, i32
  }
}

</mosaic_0001>

<llo_original>
// kernel: anti_temporal_conv2d.3
$region0: #{anti_temporal_conv2d.3}
  #allocation0 [shape = 'u32[]', space=smem, size = 0x4, offset = 0x4, fixed_abs, tag = 'smem constant byte address 0x4 - core index']
  #allocation1 [shape = 'u32[144,128]{1,0:T(1,128)}', space=vmem, size = 0x12000, scoped, tag = 'internal scratch']
  %s0 = inlined_call_operand.vmem [shape: f32[8,8,128], index: 0, kind: input, shape index: {}, may-alias: {0,3}]
  %s1 = inlined_call_operand.vmem [shape: f32[8,1], index: 1, kind: input, shape index: {}]
  %s2 = inlined_call_operand.vmem [shape: f32[8,1], index: 2, kind: input, shape index: {}]
  %s3 = inlined_call_operand.vmem [shape: f32[8,8,128], index: 3, kind: output, shape index: {}, may-alias: {0,3}]
  %s4 = sld [smem:[#allocation0]]
  $region22: #{anti_temporal_conv2d.3} parent=0
    _
  %s6 = ssub.s32 1, %s4
  %s7 = scalar_select 0, %s6, %s4
  // Predicated region
  $region2: #{anti_temporal_conv2d.3} parent=0 // pred_check
    _
  $region3: #{anti_temporal_conv2d.3} parent=0 // pred_check_branch
    %9 = sbr.rel (0) target = $region5
  $region4: #{anti_temporal_conv2d.3} parent=0 // pred_region
    _
  $region5: #{anti_temporal_conv2d.3} parent=0 // pred_fallthru
    _
  // Predicated region
  $region6: #{anti_temporal_conv2d.3} parent=0 // pred_check
    _
  $region7: #{anti_temporal_conv2d.3} parent=0 // pred_check_branch
    %11 = sbr.rel (0) target = $region9
  $region8: #{anti_temporal_conv2d.3} parent=0 // pred_region
    _
  $region9: #{anti_temporal_conv2d.3} parent=0 // pred_fallthru
    _
  // Predicated region
  $region10: #{anti_temporal_conv2d.3} parent=0 // pred_check
    _
  $region11: #{anti_temporal_conv2d.3} parent=0 // pred_check_branch
    %13 = sbr.rel (0) target = $region13
  $region12: #{anti_temporal_conv2d.3} parent=0 // pred_region
    _
  $region13: #{anti_temporal_conv2d.3} parent=0 // pred_fallthru
    _
  %v14 = vld [vmem:[%s0] sm:$0xff]
  %v15 = vld [vmem:[%s0 + $0x8] sm:$0xff]
  %v16 = vld [vmem:[%s0 + $0x10] sm:$0xff]
  %v17 = vld [vmem:[%s0 + $0x18] sm:$0xff]
  %v18 = vld [vmem:[%s0 + $0x20] sm:$0xff]
  %v19 = vld [vmem:[%s0 + $0x28] sm:$0xff]
  %v20 = vld [vmem:[%s0 + $0x30] sm:$0xff]
  %v21 = vld [vmem:[%s0 + $0x38] sm:$0xff]
  %v22 = vld [vmem:[%s1] sm:$0xff]
  %24 = vset.pattern.permute.xlu0 0
  %25 = vperm.xlu0 %24, %v22
  %v26 = vpop.permute.xlu0 %25
  %v28 = vmul.f32 %v14, %v26
  %v29 = vmul.f32 %v15, %v26
  %v30 = vmul.f32 %v16, %v26
  %v31 = vmul.f32 %v17, %v26
  %v32 = vmul.f32 %v18, %v26
  %v33 = vmul.f32 %v19, %v26
  %v34 = vmul.f32 %v20, %v26
  %v35 = vmul.f32 %v21, %v26
  %v36 = vld [vmem:[%s2] sm:$0xff]
  %38 = vset.pattern.permute.xlu0 0
  %39 = vperm.xlu0 %38, %v36
  %v40 = vpop.permute.xlu0 %39
  %v42 = vadd.f32 %v28, %v40
  %v43 = vadd.f32 %v29, %v40
  %v44 = vadd.f32 %v30, %v40
  %v45 = vadd.f32 %v31, %v40
  %v46 = vadd.f32 %v32, %v40
  %v47 = vadd.f32 %v33, %v40
  %v48 = vadd.f32 %v34, %v40
  %v49 = vadd.f32 %v35, %v40
  %50 = vst [vmem:[%s3] sm:$0xff] %v42
  %51 = vst [vmem:[%s3 + $0x8] sm:$0xff] %v43
  %52 = vst [vmem:[%s3 + $0x10] sm:$0xff] %v44
  %53 = vst [vmem:[%s3 + $0x18] sm:$0xff] %v45
  %54 = vst [vmem:[%s3 + $0x20] sm:$0xff] %v46
  %55 = vst [vmem:[%s3 + $0x28] sm:$0xff] %v47
  %56 = vst [vmem:[%s3 + $0x30] sm:$0xff] %v48
  %57 = vst [vmem:[%s3 + $0x38] sm:$0xff] %v49
  // Predicated region
  $region14: #{anti_temporal_conv2d.3} parent=0 // pred_check
    _
  $region15: #{anti_temporal_conv2d.3} parent=0 // pred_check_branch
    %59 = sbr.rel (0) target = $region17
  $region16: #{anti_temporal_conv2d.3} parent=0 // pred_region
    _
  $region17: #{anti_temporal_conv2d.3} parent=0 // pred_fallthru
    _
  // Predicated region
  $region18: #{anti_temporal_conv2d.3} parent=0 // pred_check
    _
  $region19: #{anti_temporal_conv2d.3} parent=0 // pred_check_branch
    %61 = sbr.rel (0) target = $region21
  $region20: #{anti_temporal_conv2d.3} parent=0 // pred_region
    _
  $region21: #{anti_temporal_conv2d.3} parent=0 // pred_fallthru
    _

// kernel: anti_temporal_conv2d.2
$region0: #{anti_temporal_conv2d.2}
  #allocation0 [shape = 'u32[]', space=smem, size = 0x4, offset = 0x4, fixed_abs, tag = 'smem constant byte address 0x4 - core index']
  #allocation1 [shape = 'u32[144,128]{1,0:T(1,128)}', space=vmem, size = 0x12000, scoped, tag = 'internal scratch']
  %s0 = inlined_call_operand.vmem [shape: bf16[10,4,128], index: 0, kind: input, shape index: {}]
  %s1 = inlined_call_operand.vmem [shape: bf16[3,8,4], index: 1, kind: input, shape index: {}]
  %s2 = inlined_call_operand.vmem [shape: f32[8,8,128], index: 2, kind: output, shape index: {0}]
  %s3 = inlined_call_operand.vmem [shape: f32[1,8,2], index: 3, kind: output, shape index: {1}]
  %4 = xla_tuple %s2, %s3
  %s5 = sld [smem:[#allocation0]]
  $region26: #{anti_temporal_conv2d.2} parent=0
    _
  %s7 = ssub.s32 1, %s5
  %s8 = scalar_select 0, %s7, %s5
  // Predicated region
  $region2: #{anti_temporal_conv2d.2} parent=0 // pred_check
    _
  $region3: #{anti_temporal_conv2d.2} parent=0 // pred_check_branch
    %10 = sbr.rel (0) target = $region5
  $region4: #{anti_temporal_conv2d.2} parent=0 // pred_region
    _
  $region5: #{anti_temporal_conv2d.2} parent=0 // pred_fallthru
    _
  // Predicated region
  $region6: #{anti_temporal_conv2d.2} parent=0 // pred_check
    _
  $region7: #{anti_temporal_conv2d.2} parent=0 // pred_check_branch
    %12 = sbr.rel (0) target = $region9
  $region8: #{anti_temporal_conv2d.2} parent=0 // pred_region
    _
  $region9: #{anti_temporal_conv2d.2} parent=0 // pred_fallthru
    _
  %v14 = vld [vmem:[%s0] sm:$0x3]
  %v15 = vld [vmem:[%s0 + $0x2] sm:$0x3]
  %v16 = vld [vmem:[%s0 + $0x4] sm:$0x3]
  %v17 = vld [vmem:[%s0 + $0x6] sm:$0x3]
  %v18 = vld [vmem:[%s0 + $0x8] sm:$0x3]
  %v19 = vld [vmem:[%s0 + $0xa] sm:$0x3]
  %v20 = vld [vmem:[%s0 + $0xc] sm:$0x3]
  %v21 = vld [vmem:[%s0 + $0xe] sm:$0x3]
  %v22 = vld [vmem:[%s1] sm:$0xf]
  %vm23 = vcmask 31744
  %v25 = vsel %vm23, %v22, 0
  %vm27 = vcmask 1041408
  %v29 = vsel %vm27, %v14, 0
  %31 = vmatprep.subr.bf16.mxu0 0
  %32 = vmatpush1.bf16.msra.mxu0 %v29
  %33 = vmatprep.subr.bf16.mxu0 0
  %34 = vmatpush1.bf16.msra.mxu0 0
  %35 = vmatprep.subr.bf16.mxu0 0
  %36 = vmatpush1.bf16.msra.mxu0 0
  %37 = vmatprep.subr.bf16.mxu0 0
  %38 = vmatpush1.bf16.msra.mxu0 0
  %39 = vmatprep.subr.bf16.mxu0 0
  %40 = vmatpush1.bf16.msra.mxu0 0
  %41 = vmatprep.subr.bf16.mxu0 0
  %42 = vmatpush1.bf16.msra.mxu0 0
  %43 = vmatprep.subr.bf16.mxu0 0
  %44 = vmatpush1.bf16.msra.mxu0 0
  %45 = vmatprep.subr.bf16.mxu0 0
  %46 = vmatpush1.bf16.msra.mxu0 0
  %47 = vmatprep.subr.bf16.mxu0 0
  %48 = vmatpush1.bf16.msra.mxu0 0
  %49 = vmatprep.subr.bf16.mxu0 0
  %50 = vmatpush1.bf16.msra.mxu0 0
  %51 = vmatprep.subr.bf16.mxu0 0
  %52 = vmatpush1.bf16.msra.mxu0 0
  %53 = vmatprep.subr.bf16.mxu0 0
  %54 = vmatpush1.bf16.msra.mxu0 0
  %55 = vmatprep.subr.bf16.mxu0 0
  %56 = vmatpush1.bf16.msra.mxu0 0
  %57 = vmatprep.subr.bf16.mxu0 0
  %58 = vmatpush1.bf16.msra.mxu0 0
  %59 = vmatprep.subr.bf16.mxu0 0
  %60 = vmatpush1.bf16.msra.mxu0 0
  %61 = vmatprep.subr.bf16.mxu0 0
  %62 = vmatpush1.bf16.msra.mxu0 0
  %63 = vmatprep.mubr.bf16.mxu0 0
  %64 = vmatmul.mubr.bf16.gmra.mrb[0].mxu0 %v25
  %v65 = vpop.f32.mrb[0].mxu0
  %v66 = vadd.f32 0.0, %v65
  %v67 = vpop.f32.mrb[0].mxu0
  %v68 = vpop.f32.mrb[0].mxu0
  %v69 = vpop.f32.mrb[0].mxu0
  %70 = vdwg.mxu0
  %v72 = vsel %vm27, %v15, 0
  %74 = vmatprep.subr.bf16.mxu0 0
  %75 = vmatpush1.bf16.msra.mxu0 %v72
  %76 = vmatprep.subr.bf16.mxu0 0
  %77 = vmatpush1.bf16.msra.mxu0 0
  %78 = vmatprep.subr.bf16.mxu0 0
  %79 = vmatpush1.bf16.msra.mxu0 0
  %80 = vmatprep.subr.bf16.mxu0 0
  %81 = vmatpush1.bf16.msra.mxu0 0
  %82 = vmatprep.subr.bf16.mxu0 0
  %83 = vmatpush1.bf16.msra.mxu0 0
  %84 = vmatprep.subr.bf16.mxu0 0
  %85 = vmatpush1.bf16.msra.mxu0 0
  %86 = vmatprep.subr.bf16.mxu0 0
  %87 = vmatpush1.bf16.msra.mxu0 0
  %88 = vmatprep.subr.bf16.mxu0 0
  %89 = vmatpush1.bf16.msra.mxu0 0
  %90 = vmatprep.subr.bf16.mxu0 0
  %91 = vmatpush1.bf16.msra.mxu0 0
  %92 = vmatprep.subr.bf16.mxu0 0
  %93 = vmatpush1.bf16.msra.mxu0 0
  %94 = vmatprep.subr.bf16.mxu0 0
  %95 = vmatpush1.bf16.msra.mxu0 0
  %96 = vmatprep.subr.bf16.mxu0 0
  %97 = vmatpush1.bf16.msra.mxu0 0
  %98 = vmatprep.subr.bf16.mxu0 0
  %99 = vmatpush1.bf16.msra.mxu0 0
  %100 = vmatprep.subr.bf16.mxu0 0
  %101 = vmatpush1.bf16.msra.mxu0 0
  %102 = vmatprep.subr.bf16.mxu0 0
  %103 = vmatpush1.bf16.msra.mxu0 0
  %104 = vmatprep.subr.bf16.mxu0 0
  %105 = vmatpush1.bf16.msra.mxu0 0
  %106 = vmatprep.mubr.bf16.mxu0 0
  %107 = vmatmul.mubr.bf16.gmra.mrb[0].mxu0 %v25
  %v108 = vpop.f32.mrb[0].mxu0
  %v109 = vadd.f32 0.0, %v108
  %v110 = vpop.f32.mrb[0].mxu0
  %v111 = vpop.f32.mrb[0].mxu0
  %v112 = vpop.f32.mrb[0].mxu0
  %113 = vdwg.mxu0
  %v115 = vsel %vm27, %v16, 0
  %117 = vmatprep.subr.bf16.mxu0 0
  %118 = vmatpush1.bf16.msra.mxu0 %v115
  %119 = vmatprep.subr.bf16.mxu0 0
  %120 = vmatpush1.bf16.msra.mxu0 0
  %121 = vmatprep.subr.bf16.mxu0 0
  %122 = vmatpush1.bf16.msra.mxu0 0
  %123 = vmatprep.subr.bf16.mxu0 0
  %124 = vmatpush1.bf16.msra.mxu0 0
  %125 = vmatprep.subr.bf16.mxu0 0
  %126 = vmatpush1.bf16.msra.mxu0 0
  %127 = vmatprep.subr.bf16.mxu0 0
  %128 = vmatpush1.bf16.msra.mxu0 0
  %129 = vmatprep.subr.bf16.mxu0 0
  %130 = vmatpush1.bf16.msra.mxu0 0
  %131 = vmatprep.subr.bf16.mxu0 0
  %132 = vmatpush1.bf16.msra.mxu0 0
  %133 = vmatprep.subr.bf16.mxu0 0
  %134 = vmatpush1.bf16.msra.mxu0 0
  %135 = vmatprep.subr.bf16.mxu0 0
  %136 = vmatpush1.bf16.msra.mxu0 0
  %137 = vmatprep.subr.bf16.mxu0 0
  %138 = vmatpush1.bf16.msra.mxu0 0
  %139 = vmatprep.subr.bf16.mxu0 0
  %140 = vmatpush1.bf16.msra.mxu0 0
  %141 = vmatprep.subr.bf16.mxu0 0
  %142 = vmatpush1.bf16.msra.mxu0 0
  %143 = vmatprep.subr.bf16.mxu0 0
  %144 = vmatpush1.bf16.msra.mxu0 0
  %145 = vmatprep.subr.bf16.mxu0 0
  %146 = vmatpush1.bf16.msra.mxu0 0
  %147 = vmatprep.subr.bf16.mxu0 0
  %148 = vmatpush1.bf16.msra.mxu0 0
  %149 = vmatprep.mubr.bf16.mxu0 0
  %150 = vmatmul.mubr.bf16.gmra.mrb[0].mxu0 %v25
  %v151 = vpop.f32.mrb[0].mxu0
  %v152 = vadd.f32 0.0, %v151
  %v153 = vpop.f32.mrb[0].mxu0
  %v154 = vpop.f32.mrb[0].mxu0
  %v155 = vpop.f32.mrb[0].mxu0
  %156 = vdwg.mxu0
  %v158 = vsel %vm27, %v17, 0
  %160 = vmatprep.subr.bf16.mxu0 0
  %161 = vmatpush1.bf16.msra.mxu0 %v158
  %162 = vmatprep.subr.bf16.mxu0 0
  %163 = vmatpush1.bf16.msra.mxu0 0
  %164 = vmatprep.subr.bf16.mxu0 0
  %165 = vmatpush1.bf16.msra.mxu0 0
  %166 = vmatprep.subr.bf16.mxu0 0
  %167 = vmatpush1.bf16.msra.mxu0 0
  %168 = vmatprep.subr.bf16.mxu0 0
  %169 = vmatpush1.bf16.msra.mxu0 0
  %170 = vmatprep.subr.bf16.mxu0 0
  %171 = vmatpush1.bf16.msra.mxu0 0
  %172 = vmatprep.subr.bf16.mxu0 0
  %173 = vmatpush1.bf16.msra.mxu0 0
  %174 = vmatprep.subr.bf16.mxu0 0
  %175 = vmatpush1.bf16.msra.mxu0 0
  %176 = vmatprep.subr.bf16.mxu0 0
  %177 = vmatpush1.bf16.msra.mxu0 0
  %178 = vmatprep.subr.bf16.mxu0 0
  %179 = vmatpush1.bf16.msra.mxu0 0
  %180 = vmatprep.subr.bf16.mxu0 0
  %181 = vmatpush1.bf16.msra.mxu0 0
  %182 = vmatprep.subr.bf16.mxu0 0
  %183 = vmatpush1.bf16.msra.mxu0 0
  %184 = vmatprep.subr.bf16.mxu0 0
  %185 = vmatpush1.bf16.msra.mxu0 0
  %186 = vmatprep.subr.bf16.mxu0 0
  %187 = vmatpush1.bf16.msra.mxu0 0
  %188 = vmatprep.subr.bf16.mxu0 0
  %189 = vmatpush1.bf16.msra.mxu0 0
  %190 = vmatprep.subr.bf16.mxu0 0
  %191 = vmatpush1.bf16.msra.mxu0 0
  %192 = vmatprep.mubr.bf16.mxu0 0
  %193 = vmatmul.mubr.bf16.gmra.mrb[0].mxu0 %v25
  %v194 = vpop.f32.mrb[0].mxu0
  %v195 = vadd.f32 0.0, %v194
  %v196 = vpop.f32.mrb[0].mxu0
  %v197 = vpop.f32.mrb[0].mxu0
  %v198 = vpop.f32.mrb[0].mxu0
  %199 = vdwg.mxu0
  %v201 = vsel %vm27, %v18, 0
  %203 = vmatprep.subr.bf16.mxu0 0
  %204 = vmatpush1.bf16.msra.mxu0 %v201
  %205 = vmatprep.subr.bf16.mxu0 0
  %206 = vmatpush1.bf16.msra.mxu0 0
  %207 = vmatprep.subr.bf16.mxu0 0
  %208 = vmatpush1.bf16.msra.mxu0 0
  %209 = vmatprep.subr.bf16.mxu0 0
  %210 = vmatpush1.bf16.msra.mxu0 0
  %211 = vmatprep.subr.bf16.mxu0 0
  %212 = vmatpush1.bf16.msra.mxu0 0
  %213 = vmatprep.subr.bf16.mxu0 0
  %214 = vmatpush1.bf16.msra.mxu0 0
  %215 = vmatprep.subr.bf16.mxu0 0
  %216 = vmatpush1.bf16.msra.mxu0 0
  %217 = vmatprep.subr.bf16.mxu0 0
  %218 = vmatpush1.bf16.msra.mxu0 0
  %219 = vmatprep.subr.bf16.mxu0 0
  %220 = vmatpush1.bf16.msra.mxu0 0
  %221 = vmatprep.subr.bf16.mxu0 0
  %222 = vmatpush1.bf16.msra.mxu0 0
  %223 = vmatprep.subr.bf16.mxu0 0
  %224 = vmatpush1.bf16.msra.mxu0 0
  %225 = vmatprep.subr.bf16.mxu0 0
  %226 = vmatpush1.bf16.msra.mxu0 0
  %227 = vmatprep.subr.bf16.mxu0 0
  %228 = vmatpush1.bf16.msra.mxu0 0
  %229 = vmatprep.subr.bf16.mxu0 0
  %230 = vmatpush1.bf16.msra.mxu0 0
  %231 = vmatprep.subr.bf16.mxu0 0
  %232 = vmatpush1.bf16.msra.mxu0 0
  %233 = vmatprep.subr.bf16.mxu0 0
  %234 = vmatpush1.bf16.msra.mxu0 0
  %235 = vmatprep.mubr.bf16.mxu0 0
  %236 = vmatmul.mubr.bf16.gmra.mrb[0].mxu0 %v25
  %v237 = vpop.f32.mrb[0].mxu0
  %v238 = vadd.f32 0.0, %v237
  %v239 = vpop.f32.mrb[0].mxu0
  %v240 = vpop.f32.mrb[0].mxu0
  %v241 = vpop.f32.mrb[0].mxu0
  %242 = vdwg.mxu0
  %v244 = vsel %vm27, %v19, 0
  %246 = vmatprep.subr.bf16.mxu0 0
  %247 = vmatpush1.bf16.msra.mxu0 %v244
  %248 = vmatprep.subr.bf16.mxu0 0
  %249 = vmatpush1.bf16.msra.mxu0 0
  %250 = vmatprep.subr.bf16.mxu0 0
  %251 = vmatpush1.bf16.msra.mxu0 0
  %252 = vmatprep.subr.bf16.mxu0 0
  %253 = vmatpush1.bf16.msra.mxu0 0
  %254 = vmatprep.subr.bf16.mxu0 0
  %255 = vmatpush1.bf16.msra.mxu0 0
  %256 = vmatprep.subr.bf16.mxu0 0
  %257 = vmatpush1.bf16.msra.mxu0 0
  %258 = vmatprep.subr.bf16.mxu0 0
  %259 = vmatpush1.bf16.msra.mxu0 0
  %260 = vmatprep.subr.bf16.mxu0 0
  %261 = vmatpush1.bf16.msra.mxu0 0
  %262 = vmatprep.subr.bf16.mxu0 0
  %263 = vmatpush1.bf16.msra.mxu0 0
  %264 = vmatprep.subr.bf16.mxu0 0
  %265 = vmatpush1.bf16.msra.mxu0 0
  %266 = vmatprep.subr.bf16.mxu0 0
  %267 = vmatpush1.bf16.msra.mxu0 0
  %268 = vmatprep.subr.bf16.mxu0 0
  %269 = vmatpush1.bf16.msra.mxu0 0
  %270 = vmatprep.subr.bf16.mxu0 0
  %271 = vmatpush1.bf16.msra.mxu0 0
  %272 = vmatprep.subr.bf16.mxu0 0
  %273 = vmatpush1.bf16.msra.mxu0 0
  %274 = vmatprep.subr.bf16.mxu0 0
  %275 = vmatpush1.bf16.msra.mxu0 0
  %276 = vmatprep.subr.bf16.mxu0 0
  %277 = vmatpush1.bf16.msra.mxu0 0
  %278 = vmatprep.mubr.bf16.mxu0 0
  %279 = vmatmul.mubr.bf16.gmra.mrb[0].mxu0 %v25
  %v280 = vpop.f32.mrb[0].mxu0
  %v281 = vadd.f32 0.0, %v280
  %v282 = vpop.f32.mrb[0].mxu0
  %v283 = vpop.f32.mrb[0].mxu0
  %v284 = vpop.f32.mrb[0].mxu0
  %285 = vdwg.mxu0
  %v287 = vsel %vm27, %v20, 0
  %289 = vmatprep.subr.bf16.mxu0 0
  %290 = vmatpush1.bf16.msra.mxu0 %v287
  %291 = vmatprep.subr.bf16.mxu0 0
  %292 = vmatpush1.bf16.msra.mxu0 0
  %293 = vmatprep.subr.bf16.mxu0 0
  %294 = vmatpush1.bf16.msra.mxu0 0
  %295 = vmatprep.subr.bf16.mxu0 0
  %296 = vmatpush1.bf16.msra.mxu0 0
  %297 = vmatprep.subr.bf16.mxu0 0
  %298 = vmatpush1.bf16.msra.mxu0 0
  %299 = vmatprep.subr.bf16.mxu0 0
  %300 = vmatpush1.bf16.msra.mxu0 0
  %301 = vmatprep.subr.bf16.mxu0 0
  %302 = vmatpush1.bf16.msra.mxu0 0
  %303 = vmatprep.subr.bf16.mxu0 0
  %304 = vmatpush1.bf16.msra.mxu0 0
  %305 = vmatprep.subr.bf16.mxu0 0
  %306 = vmatpush1.bf16.msra.mxu0 0
  %307 = vmatprep.subr.bf16.mxu0 0
  %308 = vmatpush1.bf16.msra.mxu0 0
  %309 = vmatprep.subr.bf16.mxu0 0
  %310 = vmatpush1.bf16.msra.mxu0 0
  %311 = vmatprep.subr.bf16.mxu0 0
  %312 = vmatpush1.bf16.msra.mxu0 0
  %313 = vmatprep.subr.bf16.mxu0 0
  %314 = vmatpush1.bf16.msra.mxu0 0
  %315 = vmatprep.subr.bf16.mxu0 0
  %316 = vmatpush1.bf16.msra.mxu0 0
  %317 = vmatprep.subr.bf16.mxu0 0
  %318 = vmatpush1.bf16.msra.mxu0 0
  %319 = vmatprep.subr.bf16.mxu0 0
  %320 = vmatpush1.bf16.msra.mxu0 0
  %321 = vmatprep.mubr.bf16.mxu0 0
  %322 = vmatmul.mubr.bf16.gmra.mrb[0].mxu0 %v25
  %v323 = vpop.f32.mrb[0].mxu0
  %v324 = vadd.f32 0.0, %v323
  %v325 = vpop.f32.mrb[0].mxu0
  %v326 = vpop.f32.mrb[0].mxu0
  %v327 = vpop.f32.mrb[0].mxu0
  %328 = vdwg.mxu0
  %v330 = vsel %vm27, %v21, 0
  %332 = vmatprep.subr.bf16.mxu0 0
  %333 = vmatpush1.bf16.msra.mxu0 %v330
  %334 = vmatprep.subr.bf16.mxu0 0
  %335 = vmatpush1.bf16.msra.mxu0 0
  %336 = vmatprep.subr.bf16.mxu0 0
  %337 = vmatpush1.bf16.msra.mxu0 0
  %338 = vmatprep.subr.bf16.mxu0 0
  %339 = vmatpush1.bf16.msra.mxu0 0
  %340 = vmatprep.subr.bf16.mxu0 0
  %341 = vmatpush1.bf16.msra.mxu0 0
  %342 = vmatprep.subr.bf16.mxu0 0
  %343 = vmatpush1.bf16.msra.mxu0 0
  %344 = vmatprep.subr.bf16.mxu0 0
  %345 = vmatpush1.bf16.msra.mxu0 0
  %346 = vmatprep.subr.bf16.mxu0 0
  %347 = vmatpush1.bf16.msra.mxu0 0
  %348 = vmatprep.subr.bf16.mxu0 0
  %349 = vmatpush1.bf16.msra.mxu0 0
  %350 = vmatprep.subr.bf16.mxu0 0
  %351 = vmatpush1.bf16.msra.mxu0 0
  %352 = vmatprep.subr.bf16.mxu0 0
  %353 = vmatpush1.bf16.msra.mxu0 0
  %354 = vmatprep.subr.bf16.mxu0 0
  %355 = vmatpush1.bf16.msra.mxu0 0
  %356 = vmatprep.subr.bf16.mxu0 0
  %357 = vmatpush1.bf16.msra.mxu0 0
  %358 = vmatprep.subr.bf16.mxu0 0
  %359 = vmatpush1.bf16.msra.mxu0 0
  %360 = vmatprep.subr.bf16.mxu0 0
  %361 = vmatpush1.bf16.msra.mxu0 0
  %362 = vmatprep.subr.bf16.mxu0 0
  %363 = vmatpush1.bf16.msra.mxu0 0
  %364 = vmatprep.mubr.bf16.mxu0 0
  %365 = vmatmul.mubr.bf16.gmra.mrb[0].mxu0 %v25
  %v366 = vpop.f32.mrb[0].mxu0
  %v367 = vadd.f32 0.0, %v366
  %v368 = vpop.f32.mrb[0].mxu0
  %v369 = vpop.f32.mrb[0].mxu0
  %v370 = vpop.f32.mrb[0].mxu0
  %371 = vdwg.mxu0
  %372 = vst [vmem:[%s2] sm:$0xff] %v66
  %373 = vst [vmem:[%s2 + $0x8] sm:$0xff] %v109
  %374 = vst [vmem:[%s2 + $0x10] sm:$0xff] %v152
  %375 = vst [vmem:[%s2 + $0x18] sm:$0xff] %v195
  %376 = vst [vmem:[%s2 + $0x20] sm:$0xff] %v238
  %377 = vst [vmem:[%s2 + $0x28] sm:$0xff] %v281
  %378 = vst [vmem:[%s2 + $0x30] sm:$0xff] %v324
  %379 = vst [vmem:[%s2 + $0x38] sm:$0xff] %v367
  %s380 = scalar_lea.vmem %s0, 2
  %v381 = vld [vmem:[%s380] sm:$0x3]
  %v382 = vld [vmem:[%s380 + $0x2] sm:$0x3]
  %v383 = vld [vmem:[%s380 + $0x4] sm:$0x3]
  %v384 = vld [vmem:[%s380 + $0x6] sm:$0x3]
  %v385 = vld [vmem:[%s380 + $0x8] sm:$0x3]
  %v386 = vld [vmem:[%s380 + $0xa] sm:$0x3]
  %v387 = vld [vmem:[%s380 + $0xc] sm:$0x3]
  %v388 = vld [vmem:[%s380 + $0xe] sm:$0x3]
  %s389 = scalar_lea.vmem %s1, 4
  %v390 = vld [vmem:[%s389] sm:$0xf]
  %v392 = vsel %vm23, %v390, 0
  %v395 = vsel %vm27, %v381, 0
  %397 = vmatprep.subr.bf16.mxu0 0
  %398 = vmatpush1.bf16.msra.mxu0 %v395
  %399 = vmatprep.subr.bf16.mxu0 0
  %400 = vmatpush1.bf16.msra.mxu0 0
  %401 = vmatprep.subr.bf16.mxu0 0
  %402 = vmatpush1.bf16.msra.mxu0 0
  %403 = vmatprep.subr.bf16.mxu0 0
  %404 = vmatpush1.bf16.msra.mxu0 0
  %405 = vmatprep.subr.bf16.mxu0 0
  %406 = vmatpush1.bf16.msra.mxu0 0
  %407 = vmatprep.subr.bf16.mxu0 0
  %408 = vmatpush1.bf16.msra.mxu0 0
  %409 = vmatprep.subr.bf16.mxu0 0
  %410 = vmatpush1.bf16.msra.mxu0 0
  %411 = vmatprep.subr.bf16.mxu0 0
  %412 = vmatpush1.bf16.msra.mxu0 0
  %413 = vmatprep.subr.bf16.mxu0 0
  %414 = vmatpush1.bf16.msra.mxu0 0
  %415 = vmatprep.subr.bf16.mxu0 0
  %416 = vmatpush1.bf16.msra.mxu0 0
  %417 = vmatprep.subr.bf16.mxu0 0
  %418 = vmatpush1.bf16.msra.mxu0 0
  %419 = vmatprep.subr.bf16.mxu0 0
  %420 = vmatpush1.bf16.msra.mxu0 0
  %421 = vmatprep.subr.bf16.mxu0 0
  %422 = vmatpush1.bf16.msra.mxu0 0
  %423 = vmatprep.subr.bf16.mxu0 0
  %424 = vmatpush1.bf16.msra.mxu0 0
  %425 = vmatprep.subr.bf16.mxu0 0
  %426 = vmatpush1.bf16.msra.mxu0 0
  %427 = vmatprep.subr.bf16.mxu0 0
  %428 = vmatpush1.bf16.msra.mxu0 0
  %429 = vmatprep.mubr.bf16.mxu0 0
  %430 = vmatmul.mubr.bf16.gmra.mrb[0].mxu0 %v392
  %v431 = vpop.f32.mrb[0].mxu0
  %v432 = vadd.f32 0.0, %v431
  %v433 = vpop.f32.mrb[0].mxu0
  %v434 = vpop.f32.mrb[0].mxu0
  %v435 = vpop.f32.mrb[0].mxu0
  %436 = vdwg.mxu0
  %v438 = vsel %vm27, %v382, 0
  %440 = vmatprep.subr.bf16.mxu0 0
  %441 = vmatpush1.bf16.msra.mxu0 %v438
  %442 = vmatprep.subr.bf16.mxu0 0
  %443 = vmatpush1.bf16.msra.mxu0 0
  %444 = vmatprep.subr.bf16.mxu0 0
  %445 = vmatpush1.bf16.msra.mxu0 0
  %446 = vmatprep.subr.bf16.mxu0 0
  %447 = vmatpush1.bf16.msra.mxu0 0
  %448 = vmatprep.subr.bf16.mxu0 0
  %449 = vmatpush1.bf16.msra.mxu0 0
  %450 = vmatprep.subr.bf16.mxu0 0
  %451 = vmatpush1.bf16.msra.mxu0 0
  %452 = vmatprep.subr.bf16.mxu0 0
  %453 = vmatpush1.bf16.msra.mxu0 0
  %454 = vmatprep.subr.bf16.mxu0 0
  %455 = vmatpush1.bf16.msra.mxu0 0
  %456 = vmatprep.subr.bf16.mxu0 0
  %457 = vmatpush1.bf16.msra.mxu0 0
  %458 = vmatprep.subr.bf16.mxu0 0
  %459 = vmatpush1.bf16.msra.mxu0 0
  %460 = vmatprep.subr.bf16.mxu0 0
  %461 = vmatpush1.bf16.msra.mxu0 0
  %462 = vmatprep.subr.bf16.mxu0 0
  %463 = vmatpush1.bf16.msra.mxu0 0
  %464 = vmatprep.subr.bf16.mxu0 0
  %465 = vmatpush1.bf16.msra.mxu0 0
  %466 = vmatprep.subr.bf16.mxu0 0
  %467 = vmatpush1.bf16.msra.mxu0 0
  %468 = vmatprep.subr.bf16.mxu0 0
  %469 = vmatpush1.bf16.msra.mxu0 0
  %470 = vmatprep.subr.bf16.mxu0 0
  %471 = vmatpush1.bf16.msra.mxu0 0
  %472 = vmatprep.mubr.bf16.mxu0 0
  %473 = vmatmul.mubr.bf16.gmra.mrb[0].mxu0 %v392
  %v474 = vpop.f32.mrb[0].mxu0
  %v475 = vadd.f32 0.0, %v474
  %v476 = vpop.f32.mrb[0].mxu0
  %v477 = vpop.f32.mrb[0].mxu0
  %v478 = vpop.f32.mrb[0].mxu0
  %479 = vdwg.mxu0
  %v481 = vsel %vm27, %v383, 0
  %483 = vmatprep.subr.bf16.mxu0 0
  %484 = vmatpush1.bf16.msra.mxu0 %v481
  %485 = vmatprep.subr.bf16.mxu0 0
  %486 = vmatpush1.bf16.msra.mxu0 0
  %487 = vmatprep.subr.bf16.mxu0 0
  %488 = vmatpush1.bf16.msra.mxu0 0
  %489 = vmatprep.subr.bf16.mxu0 0
  %490 = vmatpush1.bf16.msra.mxu0 0
  %491 = vmatprep.subr.bf16.mxu0 0
  %492 = vmatpush1.bf16.msra.mxu0 0
  %493 = vmatprep.subr.bf16.mxu0 0
  %494 = vmatpush1.bf16.msra.mxu0 0
  %495 = vmatprep.subr.bf16.mxu0 0
  %496 = vmatpush1.bf16.msra.mxu0 0
  %497 = vmatprep.subr.bf16.mxu0 0
  %498 = vmatpush1.bf16.msra.mxu0 0
  %499 = vmatprep.subr.bf16.mxu0 0
  %500 = vmatpush1.bf16.msra.mxu0 0
  %501 = vmatprep.subr.bf16.mxu0 0
  %502 = vmatpush1.bf16.msra.mxu0 0
  %503 = vmatprep.subr.bf16.mxu0 0
  %504 = vmatpush1.bf16.msra.mxu0 0
  %505 = vmatprep.subr.bf16.mxu0 0
  %506 = vmatpush1.bf16.msra.mxu0 0
  %507 = vmatprep.subr.bf16.mxu0 0
  %508 = vmatpush1.bf16.msra.mxu0 0
  %509 = vmatprep.subr.bf16.mxu0 0
  %510 = vmatpush1.bf16.msra.mxu0 0
  %511 = vmatprep.subr.bf16.mxu0 0
  %512 = vmatpush1.bf16.msra.mxu0 0
  %513 = vmatprep.subr.bf16.mxu0 0
  %514 = vmatpush1.bf16.msra.mxu0 0
  %515 = vmatprep.mubr.bf16.mxu0 0
  %516 = vmatmul.mubr.bf16.gmra.mrb[0].mxu0 %v392
  %v517 = vpop.f32.mrb[0].mxu0
  %v518 = vadd.f32 0.0, %v517
  %v519 = vpop.f32.mrb[0].mxu0
  %v520 = vpop.f32.mrb[0].mxu0
  %v521 = vpop.f32.mrb[0].mxu0
  %522 = vdwg.mxu0
  %v524 = vsel %vm27, %v384, 0
  %526 = vmatprep.subr.bf16.mxu0 0
  %527 = vmatpush1.bf16.msra.mxu0 %v524
  %528 = vmatprep.subr.bf16.mxu0 0
  %529 = vmatpush1.bf16.msra.mxu0 0
  %530 = vmatprep.subr.bf16.mxu0 0
  %531 = vmatpush1.bf16.msra.mxu0 0
  %532 = vmatprep.subr.bf16.mxu0 0
  %533 = vmatpush1.bf16.msra.mxu0 0
  %534 = vmatprep.subr.bf16.mxu0 0
  %535 = vmatpush1.bf16.msra.mxu0 0
  %536 = vmatprep.subr.bf16.mxu0 0
  %537 = vmatpush1.bf16.msra.mxu0 0
  %538 = vmatprep.subr.bf16.mxu0 0
  %539 = vmatpush1.bf16.msra.mxu0 0
  %540 = vmatprep.subr.bf16.mxu0 0
  %541 = vmatpush1.bf16.msra.mxu0 0
  %542 = vmatprep.subr.bf16.mxu0 0
  %543 = vmatpush1.bf16.msra.mxu0 0
  %544 = vmatprep.subr.bf16.mxu0 0
  %545 = vmatpush1.bf16.msra.mxu0 0
  %546 = vmatprep.subr.bf16.mxu0 0
  %547 = vmatpush1.bf16.msra.mxu0 0
  %548 = vmatprep.subr.bf16.mxu0 0
  %549 = vmatpush1.bf16.msra.mxu0 0
  %550 = vmatprep.subr.bf16.mxu0 0
  %551 = vmatpush1.bf16.msra.mxu0 0
  %552 = vmatprep.subr.bf16.mxu0 0
  %553 = vmatpush1.bf16.msra.mxu0 0
  %554 = vmatprep.subr.bf16.mxu0 0
  %555 = vmatpush1.bf16.msra.mxu0 0
  %556 = vmatprep.subr.bf16.mxu0 0
  %557 = vmatpush1.bf16.msra.mxu0 0
  %558 = vmatprep.mubr.bf16.mxu0 0
  %559 = vmatmul.mubr.bf16.gmra.mrb[0].mxu0 %v392
  %v560 = vpop.f32.mrb[0].mxu0
  %v561 = vadd.f32 0.0, %v560
  %v562 = vpop.f32.mrb[0].mxu0
  %v563 = vpop.f32.mrb[0].mxu0
  %v564 = vpop.f32.mrb[0].mxu0
  %565 = vdwg.mxu0
  %v567 = vsel %vm27, %v385, 0
  %569 = vmatprep.subr.bf16.mxu0 0
  %570 = vmatpush1.bf16.msra.mxu0 %v567
  %571 = vmatprep.subr.bf16.mxu0 0
  %572 = vmatpush1.bf16.msra.mxu0 0
  %573 = vmatprep.subr.bf16.mxu0 0
  %574 = vmatpush1.bf16.msra.mxu0 0
  %575 = vmatprep.subr.bf16.mxu0 0
  %576 = vmatpush1.bf16.msra.mxu0 0
  %577 = vmatprep.subr.bf16.mxu0 0
  %578 = vmatpush1.bf16.msra.mxu0 0
  %579 = vmatprep.subr.bf16.mxu0 0
  %580 = vmatpush1.bf16.msra.mxu0 0
  %581 = vmatprep.subr.bf16.mxu0 0
  %582 = vmatpush1.bf16.msra.mxu0 0
  %583 = vmatprep.subr.bf16.mxu0 0
  %584 = vmatpush1.bf16.msra.mxu0 0
  %585 = vmatprep.subr.bf16.mxu0 0
  %586 = vmatpush1.bf16.msra.mxu0 0
  %587 = vmatprep.subr.bf16.mxu0 0
  %588 = vmatpush1.bf16.msra.mxu0 0
  %589 = vmatprep.subr.bf16.mxu0 0
  %590 = vmatpush1.bf16.msra.mxu0 0
  %591 = vmatprep.subr.bf16.mxu0 0
  %592 = vmatpush1.bf16.msra.mxu0 0
  %593 = vmatprep.subr.bf16.mxu0 0
  %594 = vmatpush1.bf16.msra.mxu0 0
  %595 = vmatprep.subr.bf16.mxu0 0
  %596 = vmatpush1.bf16.msra.mxu0 0
  %597 = vmatprep.subr.bf16.mxu0 0
  %598 = vmatpush1.bf16.msra.mxu0 0
  %599 = vmatprep.subr.bf16.mxu0 0
  %600 = vmatpush1.bf16.msra.mxu0 0
  %601 = vmatprep.mubr.bf16.mxu0 0
  %602 = vmatmul.mubr.bf16.gmra.mrb[0].mxu0 %v392
  %v603 = vpop.f32.mrb[0].mxu0
  %v604 = vadd.f32 0.0, %v603
  %v605 = vpop.f32.mrb[0].mxu0
  %v606 = vpop.f32.mrb[0].mxu0
  %v607 = vpop.f32.mrb[0].mxu0
  %608 = vdwg.mxu0
  %v610 = vsel %vm27, %v386, 0
  %612 = vmatprep.subr.bf16.mxu0 0
  %613 = vmatpush1.bf16.msra.mxu0 %v610
  %614 = vmatprep.subr.bf16.mxu0 0
  %615 = vmatpush1.bf16.msra.mxu0 0
  %616 = vmatprep.subr.bf16.mxu0 0
  %617 = vmatpush1.bf16.msra.mxu0 0
  %618 = vmatprep.subr.bf16.mxu0 0
  %619 = vmatpush1.bf16.msra.mxu0 0
  %620 = vmatprep.subr.bf16.mxu0 0
  %621 = vmatpush1.bf16.msra.mxu0 0
  %622 = vmatprep.subr.bf16.mxu0 0
  %623 = vmatpush1.bf16.msra.mxu0 0
  %624 = vmatprep.subr.bf16.mxu0 0
  %625 = vmatpush1.bf16.msra.mxu0 0
  %626 = vmatprep.subr.bf16.mxu0 0
  %627 = vmatpush1.bf16.msra.mxu0 0
  %628 = vmatprep.subr.bf16.mxu0 0
  %629 = vmatpush1.bf16.msra.mxu0 0
  %630 = vmatprep.subr.bf16.mxu0 0
  %631 = vmatpush1.bf16.msra.mxu0 0
  %632 = vmatprep.subr.bf16.mxu0 0
  %633 = vmatpush1.bf16.msra.mxu0 0
  %634 = vmatprep.subr.bf16.mxu0 0
  %635 = vmatpush1.bf16.msra.mxu0 0
  %636 = vmatprep.subr.bf16.mxu0 0
  %637 = vmatpush1.bf16.msra.mxu0 0
  %638 = vmatprep.subr.bf16.mxu0 0
  %639 = vmatpush1.bf16.msra.mxu0 0
  %640 = vmatprep.subr.bf16.mxu0 0
  %641 = vmatpush1.bf16.msra.mxu0 0
  %642 = vmatprep.subr.bf16.mxu0 0
  %643 = vmatpush1.bf16.msra.mxu0 0
  %644 = vmatprep.mubr.bf16.mxu0 0
  %645 = vmatmul.mubr.bf16.gmra.mrb[0].mxu0 %v392
  %v646 = vpop.f32.mrb[0].mxu0
  %v647 = vadd.f32 0.0, %v646
  %v648 = vpop.f32.mrb[0].mxu0
  %v649 = vpop.f32.mrb[0].mxu0
  %v650 = vpop.f32.mrb[0].mxu0
  %651 = vdwg.mxu0
  %v653 = vsel %vm27, %v387, 0
  %655 = vmatprep.subr.bf16.mxu0 0
  %656 = vmatpush1.bf16.msra.mxu0 %v653
  %657 = vmatprep.subr.bf16.mxu0 0
  %658 = vmatpush1.bf16.msra.mxu0 0
  %659 = vmatprep.subr.bf16.mxu0 0
  %660 = vmatpush1.bf16.msra.mxu0 0
  %661 = vmatprep.subr.bf16.mxu0 0
  %662 = vmatpush1.bf16.msra.mxu0 0
  %663 = vmatprep.subr.bf16.mxu0 0
  %664 = vmatpush1.bf16.msra.mxu0 0
  %665 = vmatprep.subr.bf16.mxu0 0
  %666 = vmatpush1.bf16.msra.mxu0 0
  %667 = vmatprep.subr.bf16.mxu0 0
  %668 = vmatpush1.bf16.msra.mxu0 0
  %669 = vmatprep.subr.bf16.mxu0 0
  %670 = vmatpush1.bf16.msra.mxu0 0
  %671 = vmatprep.subr.bf16.mxu0 0
  %672 = vmatpush1.bf16.msra.mxu0 0
  %673 = vmatprep.subr.bf16.mxu0 0
  %674 = vmatpush1.bf16.msra.mxu0 0
  %675 = vmatprep.subr.bf16.mxu0 0
  %676 = vmatpush1.bf16.msra.mxu0 0
  %677 = vmatprep.subr.bf16.mxu0 0
  %678 = vmatpush1.bf16.msra.mxu0 0
  %679 = vmatprep.subr.bf16.mxu0 0
  %680 = vmatpush1.bf16.msra.mxu0 0
  %681 = vmatprep.subr.bf16.mxu0 0
  %682 = vmatpush1.bf16.msra.mxu0 0
  %683 = vmatprep.subr.bf16.mxu0 0
  %684 = vmatpush1.bf16.msra.mxu0 0
  %685 = vmatprep.subr.bf16.mxu0 0
  %686 = vmatpush1.bf16.msra.mxu0 0
  %687 = vmatprep.mubr.bf16.mxu0 0
  %688 = vmatmul.mubr.bf16.gmra.mrb[0].mxu0 %v392
  %v689 = vpop.f32.mrb[0].mxu0
  %v690 = vadd.f32 0.0, %v689
  %v691 = vpop.f32.mrb[0].mxu0
  %v692 = vpop.f32.mrb[0].mxu0
  %v693 = vpop.f32.mrb[0].mxu0
  %694 = vdwg.mxu0
  %v696 = vsel %vm27, %v388, 0
  %698 = vmatprep.subr.bf16.mxu0 0
  %699 = vmatpush1.bf16.msra.mxu0 %v696
  %700 = vmatprep.subr.bf16.mxu0 0
  %701 = vmatpush1.bf16.msra.mxu0 0
  %702 = vmatprep.subr.bf16.mxu0 0
  %703 = vmatpush1.bf16.msra.mxu0 0
  %704 = vmatprep.subr.bf16.mxu0 0
  %705 = vmatpush1.bf16.msra.mxu0 0
  %706 = vmatprep.subr.bf16.mxu0 0
  %707 = vmatpush1.bf16.msra.mxu0 0
  %708 = vmatprep.subr.bf16.mxu0 0
  %709 = vmatpush1.bf16.msra.mxu0 0
  %710 = vmatprep.subr.bf16.mxu0 0
  %711 = vmatpush1.bf16.msra.mxu0 0
  %712 = vmatprep.subr.bf16.mxu0 0
  %713 = vmatpush1.bf16.msra.mxu0 0
  %714 = vmatprep.subr.bf16.mxu0 0
  %715 = vmatpush1.bf16.msra.mxu0 0
  %716 = vmatprep.subr.bf16.mxu0 0
  %717 = vmatpush1.bf16.msra.mxu0 0
  %718 = vmatprep.subr.bf16.mxu0 0
  %719 = vmatpush1.bf16.msra.mxu0 0
  %720 = vmatprep.subr.bf16.mxu0 0
  %721 = vmatpush1.bf16.msra.mxu0 0
  %722 = vmatprep.subr.bf16.mxu0 0
  %723 = vmatpush1.bf16.msra.mxu0 0
  %724 = vmatprep.subr.bf16.mxu0 0
  %725 = vmatpush1.bf16.msra.mxu0 0
  %726 = vmatprep.subr.bf16.mxu0 0
  %727 = vmatpush1.bf16.msra.mxu0 0
  %728 = vmatprep.subr.bf16.mxu0 0
  %729 = vmatpush1.bf16.msra.mxu0 0
  %730 = vmatprep.mubr.bf16.mxu0 0
  %731 = vmatmul.mubr.bf16.gmra.mrb[0].mxu0 %v392
  %v732 = vpop.f32.mrb[0].mxu0
  %v733 = vadd.f32 0.0, %v732
  %v734 = vpop.f32.mrb[0].mxu0
  %v735 = vpop.f32.mrb[0].mxu0
  %v736 = vpop.f32.mrb[0].mxu0
  %737 = vdwg.mxu0
  %v738 = vld [vmem:[%s2] sm:$0xff]
  %v739 = vld [vmem:[%s2 + $0x8] sm:$0xff]
  %v740 = vld [vmem:[%s2 + $0x10] sm:$0xff]
  %v741 = vld [vmem:[%s2 + $0x18] sm:$0xff]
  %v742 = vld [vmem:[%s2 + $0x20] sm:$0xff]
  %v743 = vld [vmem:[%s2 + $0x28] sm:$0xff]
  %v744 = vld [vmem:[%s2 + $0x30] sm:$0xff]
  %v745 = vld [vmem:[%s2 + $0x38] sm:$0xff]
  %v746 = vadd.f32 %v738, %v432
  %v747 = vadd.f32 %v739, %v475
  %v748 = vadd.f32 %v740, %v518
  %v749 = vadd.f32 %v741, %v561
  %v750 = vadd.f32 %v742, %v604
  %v751 = vadd.f32 %v743, %v647
  %v752 = vadd.f32 %v744, %v690
  %v753 = vadd.f32 %v745, %v733
  %754 = vst [vmem:[%s2] sm:$0xff] %v746
  %755 = vst [vmem:[%s2 + $0x8] sm:$0xff] %v747
  %756 = vst [vmem:[%s2 + $0x10] sm:$0xff] %v748
  %757 = vst [vmem:[%s2 + $0x18] sm:$0xff] %v749
  %758 = vst [vmem:[%s2 + $0x20] sm:$0xff] %v750
  %759 = vst [vmem:[%s2 + $0x28] sm:$0xff] %v751
  %760 = vst [vmem:[%s2 + $0x30] sm:$0xff] %v752
  %761 = vst [vmem:[%s2 + $0x38] sm:$0xff] %v753
  %s762 = scalar_lea.vmem %s0, 4
  %v763 = vld [vmem:[%s762] sm:$0x3]
  %v764 = vld [vmem:[%s762 + $0x2] sm:$0x3]
  %v765 = vld [vmem:[%s762 + $0x4] sm:$0x3]
  %v766 = vld [vmem:[%s762 + $0x6] sm:$0x3]
  %v767 = vld [vmem:[%s762 + $0x8] sm:$0x3]
  %v768 = vld [vmem:[%s762 + $0xa] sm:$0x3]
  %v769 = vld [vmem:[%s762 + $0xc] sm:$0x3]
  %v770 = vld [vmem:[%s762 + $0xe] sm:$0x3]
  %s771 = scalar_lea.vmem %s1, 8
  %v772 = vld [vmem:[%s771] sm:$0xf]
  %v774 = vsel %vm23, %v772, 0
  %v777 = vsel %vm27, %v763, 0
  %779 = vmatprep.subr.bf16.mxu0 0
  %780 = vmatpush1.bf16.msra.mxu0 %v777
  %781 = vmatprep.subr.bf16.mxu0 0
  %782 = vmatpush1.bf16.msra.mxu0 0
  %783 = vmatprep.subr.bf16.mxu0 0
  %784 = vmatpush1.bf16.msra.mxu0 0
  %785 = vmatprep.subr.bf16.mxu0 0
  %786 = vmatpush1.bf16.msra.mxu0 0
  %787 = vmatprep.subr.bf16.mxu0 0
  %788 = vmatpush1.bf16.msra.mxu0 0
  %789 = vmatprep.subr.bf16.mxu0 0
  %790 = vmatpush1.bf16.msra.mxu0 0
  %791 = vmatprep.subr.bf16.mxu0 0
  %792 = vmatpush1.bf16.msra.mxu0 0
  %793 = vmatprep.subr.bf16.mxu0 0
  %794 = vmatpush1.bf16.msra.mxu0 0
  %795 = vmatprep.subr.bf16.mxu0 0
  %796 = vmatpush1.bf16.msra.mxu0 0
  %797 = vmatprep.subr.bf16.mxu0 0
  %798 = vmatpush1.bf16.msra.mxu0 0
  %799 = vmatprep.subr.bf16.mxu0 0
  %800 = vmatpush1.bf16.msra.mxu0 0
  %801 = vmatprep.subr.bf16.mxu0 0
  %802 = vmatpush1.bf16.msra.mxu0 0
  %803 = vmatprep.subr.bf16.mxu0 0
  %804 = vmatpush1.bf16.msra.mxu0 0
  %805 = vmatprep.subr.bf16.mxu0 0
  %806 = vmatpush1.bf16.msra.mxu0 0
  %807 = vmatprep.subr.bf16.mxu0 0
  %808 = vmatpush1.bf16.msra.mxu0 0
  %809 = vmatprep.subr.bf16.mxu0 0
  %810 = vmatpush1.bf16.msra.mxu0 0
  %811 = vmatprep.mubr.bf16.mxu0 0
  %812 = vmatmul.mubr.bf16.gmra.mrb[0].mxu0 %v774
  %v813 = vpop.f32.mrb[0].mxu0
  %v814 = vadd.f32 0.0, %v813
  %v815 = vpop.f32.mrb[0].mxu0
  %v816 = vpop.f32.mrb[0].mxu0
  %v817 = vpop.f32.mrb[0].mxu0
  %818 = vdwg.mxu0
  %v820 = vsel %vm27, %v764, 0
  %822 = vmatprep.subr.bf16.mxu0 0
  %823 = vmatpush1.bf16.msra.mxu0 %v820
  %824 = vmatprep.subr.bf16.mxu0 0
  %825 = vmatpush1.bf16.msra.mxu0 0
  %826 = vmatprep.subr.bf16.mxu0 0
  %827 = vmatpush1.bf16.msra.mxu0 0
  %828 = vmatprep.subr.bf16.mxu0 0
  %829 = vmatpush1.bf16.msra.mxu0 0
  %830 = vmatprep.subr.bf16.mxu0 0
  %831 = vmatpush1.bf16.msra.mxu0 0
  %832 = vmatprep.subr.bf16.mxu0 0
  %833 = vmatpush1.bf16.msra.mxu0 0
  %834 = vmatprep.subr.bf16.mxu0 0
  %835 = vmatpush1.bf16.msra.mxu0 0
  %836 = vmatprep.subr.bf16.mxu0 0
  %837 = vmatpush1.bf16.msra.mxu0 0
  %838 = vmatprep.subr.bf16.mxu0 0
  %839 = vmatpush1.bf16.msra.mxu0 0
  %840 = vmatprep.subr.bf16.mxu0 0
  %841 = vmatpush1.bf16.msra.mxu0 0
  %842 = vmatprep.subr.bf16.mxu0 0
  %843 = vmatpush1.bf16.msra.mxu0 0
  %844 = vmatprep.subr.bf16.mxu0 0
  %845 = vmatpush1.bf16.msra.mxu0 0
  %846 = vmatprep.subr.bf16.mxu0 0
  %847 = vmatpush1.bf16.msra.mxu0 0
  %848 = vmatprep.subr.bf16.mxu0 0
  %849 = vmatpush1.bf16.msra.mxu0 0
  %850 = vmatprep.subr.bf16.mxu0 0
  %851 = vmatpush1.bf16.msra.mxu0 0
  %852 = vmatprep.subr.bf16.mxu0 0
  %853 = vmatpush1.bf16.msra.mxu0 0
  %854 = vmatprep.mubr.bf16.mxu0 0
  %855 = vmatmul.mubr.bf16.gmra.mrb[0].mxu0 %v774
  %v856 = vpop.f32.mrb[0].mxu0
  %v857 = vadd.f32 0.0, %v856
  %v858 = vpop.f32.mrb[0].mxu0
  %v859 = vpop.f32.mrb[0].mxu0
  %v860 = vpop.f32.mrb[0].mxu0
  %861 = vdwg.mxu0
  %v863 = vsel %vm27, %v765, 0
  %865 = vmatprep.subr.bf16.mxu0 0
  %866 = vmatpush1.bf16.msra.mxu0 %v863
  %867 = vmatprep.subr.bf16.mxu0 0
  %868 = vmatpush1.bf16.msra.mxu0 0
  %869 = vmatprep.subr.bf16.mxu0 0
  %870 = vmatpush1.bf16.msra.mxu0 0
  %871 = vmatprep.subr.bf16.mxu0 0
  %872 = vmatpush1.bf16.msra.mxu0 0
  %873 = vmatprep.subr.bf16.mxu0 0
  %874 = vmatpush1.bf16.msra.mxu0 0
  %875 = vmatprep.subr.bf16.mxu0 0
  %876 = vmatpush1.bf16.msra.mxu0 0
  %877 = vmatprep.subr.bf16.mxu0 0
  %878 = vmatpush1.bf16.msra.mxu0 0
  %879 = vmatprep.subr.bf16.mxu0 0
  %880 = vmatpush1.bf16.msra.mxu0 0
  %881 = vmatprep.subr.bf16.mxu0 0
  %882 = vmatpush1.bf16.msra.mxu0 0
  %883 = vmatprep.subr.bf16.mxu0 0
  %884 = vmatpush1.bf16.msra.mxu0 0
  %885 = vmatprep.subr.bf16.mxu0 0
  %886 = vmatpush1.bf16.msra.mxu0 0
  %887 = vmatprep.subr.bf16.mxu0 0
  %888 = vmatpush1.bf16.msra.mxu0 0
  %889 = vmatprep.subr.bf16.mxu0 0
  %890 = vmatpush1.bf16.msra.mxu0 0
  %891 = vmatprep.subr.bf16.mxu0 0
  %892 = vmatpush1.bf16.msra.mxu0 0
  %893 = vmatprep.subr.bf16.mxu0 0
  %894 = vmatpush1.bf16.msra.mxu0 0
  %895 = vmatprep.subr.bf16.mxu0 0
  %896 = vmatpush1.bf16.msra.mxu0 0
  %897 = vmatprep.mubr.bf16.mxu0 0
  %898 = vmatmul.mubr.bf16.gmra.mrb[0].mxu0 %v774
  %v899 = vpop.f32.mrb[0].mxu0
  %v900 = vadd.f32 0.0, %v899
  %v901 = vpop.f32.mrb[0].mxu0
  %v902 = vpop.f32.mrb[0].mxu0
  %v903 = vpop.f32.mrb[0].mxu0
  %904 = vdwg.mxu0
  %v906 = vsel %vm27, %v766, 0
  %908 = vmatprep.subr.bf16.mxu0 0
  %909 = vmatpush1.bf16.msra.mxu0 %v906
  %910 = vmatprep.subr.bf16.mxu0 0
  %911 = vmatpush1.bf16.msra.mxu0 0
  %912 = vmatprep.subr.bf16.mxu0 0
  %913 = vmatpush1.bf16.msra.mxu0 0
  %914 = vmatprep.subr.bf16.mxu0 0
  %915 = vmatpush1.bf16.msra.mxu0 0
  %916 = vmatprep.subr.bf16.mxu0 0
  %917 = vmatpush1.bf16.msra.mxu0 0
  %918 = vmatprep.subr.bf16.mxu0 0
  %919 = vmatpush1.bf16.msra.mxu0 0
  %920 = vmatprep.subr.bf16.mxu0 0
  %921 = vmatpush1.bf16.msra.mxu0 0
  %922 = vmatprep.subr.bf16.mxu0 0
  %923 = vmatpush1.bf16.msra.mxu0 0
  %924 = vmatprep.subr.bf16.mxu0 0
  %925 = vmatpush1.bf16.msra.mxu0 0
  %926 = vmatprep.subr.bf16.mxu0 0
  %927 = vmatpush1.bf16.msra.mxu0 0
  %928 = vmatprep.subr.bf16.mxu0 0
  %929 = vmatpush1.bf16.msra.mxu0 0
  %930 = vmatprep.subr.bf16.mxu0 0
  %931 = vmatpush1.bf16.msra.mxu0 0
  %932 = vmatprep.subr.bf16.mxu0 0
  %933 = vmatpush1.bf16.msra.mxu0 0
  %934 = vmatprep.subr.bf16.mxu0 0
  %935 = vmatpush1.bf16.msra.mxu0 0
  %936 = vmatprep.subr.bf16.mxu0 0
  %937 = vmatpush1.bf16.msra.mxu0 0
  %938 = vmatprep.subr.bf16.mxu0 0
  %939 = vmatpush1.bf16.msra.mxu0 0
  %940 = vmatprep.mubr.bf16.mxu0 0
  %941 = vmatmul.mubr.bf16.gmra.mrb[0].mxu0 %v774
  %v942 = vpop.f32.mrb[0].mxu0
  %v943 = vadd.f32 0.0, %v942
  %v944 = vpop.f32.mrb[0].mxu0
  %v945 = vpop.f32.mrb[0].mxu0
  %v946 = vpop.f32.mrb[0].mxu0
  %947 = vdwg.mxu0
  %v949 = vsel %vm27, %v767, 0
  %951 = vmatprep.subr.bf16.mxu0 0
  %952 = vmatpush1.bf16.msra.mxu0 %v949
  %953 = vmatprep.subr.bf16.mxu0 0
  %954 = vmatpush1.bf16.msra.mxu0 0
  %955 = vmatprep.subr.bf16.mxu0 0
  %956 = vmatpush1.bf16.msra.mxu0 0
  %957 = vmatprep.subr.bf16.mxu0 0
  %958 = vmatpush1.bf16.msra.mxu0 0
  %959 = vmatprep.subr.bf16.mxu0 0
  %960 = vmatpush1.bf16.msra.mxu0 0
  %961 = vmatprep.subr.bf16.mxu0 0
  %962 = vmatpush1.bf16.msra.mxu0 0
  %963 = vmatprep.subr.bf16.mxu0 0
  %964 = vmatpush1.bf16.msra.mxu0 0
  %965 = vmatprep.subr.bf16.mxu0 0
  %966 = vmatpush1.bf16.msra.mxu0 0
  %967 = vmatprep.subr.bf16.mxu0 0
  %968 = vmatpush1.bf16.msra.mxu0 0
  %969 = vmatprep.subr.bf16.mxu0 0
  %970 = vmatpush1.bf16.msra.mxu0 0
  %971 = vmatprep.subr.bf16.mxu0 0
  %972 = vmatpush1.bf16.msra.mxu0 0
  %973 = vmatprep.subr.bf16.mxu0 0
  %974 = vmatpush1.bf16.msra.mxu0 0
  %975 = vmatprep.subr.bf16.mxu0 0
  %976 = vmatpush1.bf16.msra.mxu0 0
  %977 = vmatprep.subr.bf16.mxu0 0
  %978 = vmatpush1.bf16.msra.mxu0 0
  %979 = vmatprep.subr.bf16.mxu0 0
  %980 = vmatpush1.bf16.msra.mxu0 0
  %981 = vmatprep.subr.bf16.mxu0 0
  %982 = vmatpush1.bf16.msra.mxu0 0
  %983 = vmatprep.mubr.bf16.mxu0 0
  %984 = vmatmul.mubr.bf16.gmra.mrb[0].mxu0 %v774
  %v985 = vpop.f32.mrb[0].mxu0
  %v986 = vadd.f32 0.0, %v985
  %v987 = vpop.f32.mrb[0].mxu0
  %v988 = vpop.f32.mrb[0].mxu0
  %v989 = vpop.f32.mrb[0].mxu0
  %990 = vdwg.mxu0
  %v992 = vsel %vm27, %v768, 0
  %994 = vmatprep.subr.bf16.mxu0 0
  %995 = vmatpush1.bf16.msra.mxu0 %v992
  %996 = vmatprep.subr.bf16.mxu0 0
  %997 = vmatpush1.bf16.msra.mxu0 0
  %998 = vmatprep.subr.bf16.mxu0 0
  %999 = vmatpush1.bf16.msra.mxu0 0
  %1000 = vmatprep.subr.bf16.mxu0 0
  %1001 = vmatpush1.bf16.msra.mxu0 0
  %1002 = vmatprep.subr.bf16.mxu0 0
  %1003 = vmatpush1.bf16.msra.mxu0 0
  %1004 = vmatprep.subr.bf16.mxu0 0
  %1005 = vmatpush1.bf16.msra.mxu0 0
  %1006 = vmatprep.subr.bf16.mxu0 0
  %1007 = vmatpush1.bf16.msra.mxu0 0
  %1008 = vmatprep.subr.bf16.mxu0 0
  %1009 = vmatpush1.bf16.msra.mxu0 0
  %1010 = vmatprep.subr.bf16.mxu0 0
  %1011 = vmatpush1.bf16.msra.mxu0 0
  %1012 = vmatprep.subr.bf16.mxu0 0
  %1013 = vmatpush1.bf16.msra.mxu0 0
  %1014 = vmatprep.subr.bf16.mxu0 0
  %1015 = vmatpush1.bf16.msra.mxu0 0
  %1016 = vmatprep.subr.bf16.mxu0 0
  %1017 = vmatpush1.bf16.msra.mxu0 0
  %1018 = vmatprep.subr.bf16.mxu0 0
  %1019 = vmatpush1.bf16.msra.mxu0 0
  %1020 = vmatprep.subr.bf16.mxu0 0
  %1021 = vmatpush1.bf16.msra.mxu0 0
  %1022 = vmatprep.subr.bf16.mxu0 0
  %1023 = vmatpush1.bf16.msra.mxu0 0
  %1024 = vmatprep.subr.bf16.mxu0 0
  %1025 = vmatpush1.bf16.msra.mxu0 0
  %1026 = vmatprep.mubr.bf16.mxu0 0
  %1027 = vmatmul.mubr.bf16.gmra.mrb[0].mxu0 %v774
  %v1028 = vpop.f32.mrb[0].mxu0
  %v1029 = vadd.f32 0.0, %v1028
  %v1030 = vpop.f32.mrb[0].mxu0
  %v1031 = vpop.f32.mrb[0].mxu0
  %v1032 = vpop.f32.mrb[0].mxu0
  %1033 = vdwg.mxu0
  %v1035 = vsel %vm27, %v769, 0
  %1037 = vmatprep.subr.bf16.mxu0 0
  %1038 = vmatpush1.bf16.msra.mxu0 %v1035
  %1039 = vmatprep.subr.bf16.mxu0 0
  %1040 = vmatpush1.bf16.msra.mxu0 0
  %1041 = vmatprep.subr.bf16.mxu0 0
  %1042 = vmatpush1.bf16.msra.mxu0 0
  %1043 = vmatprep.subr.bf16.mxu0 0
  %1044 = vmatpush1.bf16.msra.mxu0 0
  %1045 = vmatprep.subr.bf16.mxu0 0
  %1046 = vmatpush1.bf16.msra.mxu0 0
  %1047 = vmatprep.subr.bf16.mxu0 0
  %1048 = vmatpush1.bf16.msra.mxu0 0
  %1049 = vmatprep.subr.bf16.mxu0 0
  %1050 = vmatpush1.bf16.msra.mxu0 0
  %1051 = vmatprep.subr.bf16.mxu0 0
  %1052 = vmatpush1.bf16.msra.mxu0 0
  %1053 = vmatprep.subr.bf16.mxu0 0
  %1054 = vmatpush1.bf16.msra.mxu0 0
  %1055 = vmatprep.subr.bf16.mxu0 0
  %1056 = vmatpush1.bf16.msra.mxu0 0
  %1057 = vmatprep.subr.bf16.mxu0 0
  %1058 = vmatpush1.bf16.msra.mxu0 0
  %1059 = vmatprep.subr.bf16.mxu0 0
  %1060 = vmatpush1.bf16.msra.mxu0 0
  %1061 = vmatprep.subr.bf16.mxu0 0
  %1062 = vmatpush1.bf16.msra.mxu0 0
  %1063 = vmatprep.subr.bf16.mxu0 0
  %1064 = vmatpush1.bf16.msra.mxu0 0
  %1065 = vmatprep.subr.bf16.mxu0 0
  %1066 = vmatpush1.bf16.msra.mxu0 0
  %1067 = vmatprep.subr.bf16.mxu0 0
  %1068 = vmatpush1.bf16.msra.mxu0 0
  %1069 = vmatprep.mubr.bf16.mxu0 0
  %1070 = vmatmul.mubr.bf16.gmra.mrb[0].mxu0 %v774
  %v1071 = vpop.f32.mrb[0].mxu0
  %v1072 = vadd.f32 0.0, %v1071
  %v1073 = vpop.f32.mrb[0].mxu0
  %v1074 = vpop.f32.mrb[0].mxu0
  %v1075 = vpop.f32.mrb[0].mxu0
  %1076 = vdwg.mxu0
  %v1078 = vsel %vm27, %v770, 0
  %1080 = vmatprep.subr.bf16.mxu0 0
  %1081 = vmatpush1.bf16.msra.mxu0 %v1078
  %1082 = vmatprep.subr.bf16.mxu0 0
  %1083 = vmatpush1.bf16.msra.mxu0 0
  %1084 = vmatprep.subr.bf16.mxu0 0
  %1085 = vmatpush1.bf16.msra.mxu0 0
  %1086 = vmatprep.subr.bf16.mxu0 0
  %1087 = vmatpush1.bf16.msra.mxu0 0
  %1088 = vmatprep.subr.bf16.mxu0 0
  %1089 = vmatpush1.bf16.msra.mxu0 0
  %1090 = vmatprep.subr.bf16.mxu0 0
  %1091 = vmatpush1.bf16.msra.mxu0 0
  %1092 = vmatprep.subr.bf16.mxu0 0
  %1093 = vmatpush1.bf16.msra.mxu0 0
  %1094 = vmatprep.subr.bf16.mxu0 0
  %1095 = vmatpush1.bf16.msra.mxu0 0
  %1096 = vmatprep.subr.bf16.mxu0 0
  %1097 = vmatpush1.bf16.msra.mxu0 0
  %1098 = vmatprep.subr.bf16.mxu0 0
  %1099 = vmatpush1.bf16.msra.mxu0 0
  %1100 = vmatprep.subr.bf16.mxu0 0
  %1101 = vmatpush1.bf16.msra.mxu0 0
  %1102 = vmatprep.subr.bf16.mxu0 0
  %1103 = vmatpush1.bf16.msra.mxu0 0
  %1104 = vmatprep.subr.bf16.mxu0 0
  %1105 = vmatpush1.bf16.msra.mxu0 0
  %1106 = vmatprep.subr.bf16.mxu0 0
  %1107 = vmatpush1.bf16.msra.mxu0 0
  %1108 = vmatprep.subr.bf16.mxu0 0
  %1109 = vmatpush1.bf16.msra.mxu0 0
  %1110 = vmatprep.subr.bf16.mxu0 0
  %1111 = vmatpush1.bf16.msra.mxu0 0
  %1112 = vmatprep.mubr.bf16.mxu0 0
  %1113 = vmatmul.mubr.bf16.gmra.mrb[0].mxu0 %v774
  %v1114 = vpop.f32.mrb[0].mxu0
  %v1115 = vadd.f32 0.0, %v1114
  %v1116 = vpop.f32.mrb[0].mxu0
  %v1117 = vpop.f32.mrb[0].mxu0
  %v1118 = vpop.f32.mrb[0].mxu0
  %1119 = vdwg.mxu0
  %v1120 = vld [vmem:[%s2] sm:$0xff]
  %v1121 = vld [vmem:[%s2 + $0x8] sm:$0xff]
  %v1122 = vld [vmem:[%s2 + $0x10] sm:$0xff]
  %v1123 = vld [vmem:[%s2 + $0x18] sm:$0xff]
  %v1124 = vld [vmem:[%s2 + $0x20] sm:$0xff]
  %v1125 = vld [vmem:[%s2 + $0x28] sm:$0xff]
  %v1126 = vld [vmem:[%s2 + $0x30] sm:$0xff]
  %v1127 = vld [vmem:[%s2 + $0x38] sm:$0xff]
  %v1128 = vadd.f32 %v1120, %v814
  %v1129 = vadd.f32 %v1121, %v857
  %v1130 = vadd.f32 %v1122, %v900
  %v1131 = vadd.f32 %v1123, %v943
  %v1132 = vadd.f32 %v1124, %v986
  %v1133 = vadd.f32 %v1125, %v1029
  %v1134 = vadd.f32 %v1126, %v1072
  %v1135 = vadd.f32 %v1127, %v1115
  %1136 = vst [vmem:[%s2] sm:$0xff] %v1128
  %1137 = vst [vmem:[%s2 + $0x8] sm:$0xff] %v1129
  %1138 = vst [vmem:[%s2 + $0x10] sm:$0xff] %v1130
  %1139 = vst [vmem:[%s2 + $0x18] sm:$0xff] %v1131
  %1140 = vst [vmem:[%s2 + $0x20] sm:$0xff] %v1132
  %1141 = vst [vmem:[%s2 + $0x28] sm:$0xff] %v1133
  %1142 = vst [vmem:[%s2 + $0x30] sm:$0xff] %v1134
  %1143 = vst [vmem:[%s2 + $0x38] sm:$0xff] %v1135
  %v1144 = vld [vmem:[%s2] sm:$0xff]
  %v1145 = vld [vmem:[%s2 + $0x8] sm:$0xff]
  %v1146 = vld [vmem:[%s2 + $0x10] sm:$0xff]
  %v1147 = vld [vmem:[%s2 + $0x18] sm:$0xff]
  %v1148 = vld [vmem:[%s2 + $0x20] sm:$0xff]
  %v1149 = vld [vmem:[%s2 + $0x28] sm:$0xff]
  %v1150 = vld [vmem:[%s2 + $0x30] sm:$0xff]
  %v1151 = vld [vmem:[%s2 + $0x38] sm:$0xff]
  %v1152 = vadd.f32 %v1144, %v1145
  %v1153 = vadd.f32 %v1152, %v1146
  %v1154 = vadd.f32 %v1153, %v1147
  %v1155 = vadd.f32 %v1154, %v1148
  %v1156 = vadd.f32 %v1155, %v1149
  %v1157 = vadd.f32 %v1156, %v1150
  %v1158 = vadd.f32 %v1157, %v1151
  %1159 = vadd.xlane.f32.xlu0 %v1158
  %v1160 = vpop.xlane.xlu0 %1159
  %v1161 = vmul.f32 %v1144, %v1144
  %v1162 = vmul.f32 %v1145, %v1145
  %v1163 = vmul.f32 %v1146, %v1146
  %v1164 = vmul.f32 %v1147, %v1147
  %v1165 = vmul.f32 %v1148, %v1148
  %v1166 = vmul.f32 %v1149, %v1149
  %v1167 = vmul.f32 %v1150, %v1150
  %v1168 = vmul.f32 %v1151, %v1151
  %v1169 = vadd.f32 %v1161, %v1162
  %v1170 = vadd.f32 %v1169, %v1163
  %v1171 = vadd.f32 %v1170, %v1164
  %v1172 = vadd.f32 %v1171, %v1165
  %v1173 = vadd.f32 %v1172, %v1166
  %v1174 = vadd.f32 %v1173, %v1167
  %v1175 = vadd.f32 %v1174, %v1168
  %1176 = vadd.xlane.f32.xlu0 %v1175
  %v1177 = vpop.xlane.xlu0 %1176
  %vm1178 = vcmask 7168
  %v1179 = vsel %vm1178, %v1160, %v1177
  %vm1180 = vcmask 15360
  %1181 = vst.msk [vmem:[%s3] sm:$0xff] %vm1180, %v1179
  // Predicated region
  $region10: #{anti_temporal_conv2d.2} parent=0 // pred_check
    _
  $region11: #{anti_temporal_conv2d.2} parent=0 // pred_check_branch
    %1183 = sbr.rel (0) target = $region13
  $region12: #{anti_temporal_conv2d.2} parent=0 // pred_region
    _
  $region13: #{anti_temporal_conv2d.2} parent=0 // pred_fallthru
    _
  // Predicated region
  $region14: #{anti_temporal_conv2d.2} parent=0 // pred_check
    _
  $region15: #{anti_temporal_conv2d.2} parent=0 // pred_check_branch
    %1185 = sbr.rel (0) target = $region17
  $region16: #{anti_temporal_conv2d.2} parent=0 // pred_region
    _
  $region17: #{anti_temporal_conv2d.2} parent=0 // pred_fallthru
    _
  // Predicated region
  $region18: #{anti_temporal_conv2d.2} parent=0 // pred_check
    _
  $region19: #{anti_temporal_conv2d.2} parent=0 // pred_check_branch
    %1187 = sbr.rel (0) target = $region21
  $region20: #{anti_temporal_conv2d.2} parent=0 // pred_region
    _
  $region21: #{anti_temporal_conv2d.2} parent=0 // pred_fallthru
    _
  // Predicated region
  $region22: #{anti_temporal_conv2d.2} parent=0 // pred_check
    _
  $region23: #{anti_temporal_conv2d.2} parent=0 // pred_check_branch
    %1189 = sbr.rel (0) target = $region25
  $region24: #{anti_temporal_conv2d.2} parent=0 // pred_region
    _
  $region25: #{anti_temporal_conv2d.2} parent=0 // pred_fallthru
    _

</llo_original>
